<compile_context>
chip_gen: v5e
topology: v5e:2x2
jax: 0.10.0
libtpu: 0.0.40
codegen_flags: <defaults>
</compile_context>

<pallas_src>
import functools

import jax
import jax.numpy as jnp
from jax import lax
from jax.experimental import pallas as pl
from jax.experimental.pallas import tpu as pltpu


def cross_attention_kernel(q_in_ref, kv_in_ref,
                           wq_ref, wk_ref, wv_ref,
                           gq_ref, bq_ref, gk_ref, bk_ref,
                           seg_ref, wp_ref, bp_ref,
                           out_ref,
                           attn_scratch,
                           *, num_heads, head_dim, mxu_dtype, eps=1e-5):
    bt, n_q, _ = q_in_ref.shape
    _, n_kv, _ = kv_in_ref.shape
    out_dim = num_heads * head_dim
    mq = bt * n_q
    mkv = bt * n_kv

    # Flatten (batch_block, seq) -> rows so each projection is one big
    # [M, K] @ [K, N] for the MXU (weights already (in_dim, out_dim)).
    q_in = q_in_ref[...].reshape(mq, -1)
    kv_in = kv_in_ref[...].reshape(mkv, -1)

    q = jnp.dot(q_in, wq_ref[...], preferred_element_type=jnp.float32)   # (mq,  out_dim)
    k = jnp.dot(kv_in, wk_ref[...], preferred_element_type=jnp.float32)  # (mkv, out_dim)
    v = jnp.dot(kv_in, wv_ref[...], preferred_element_type=jnp.float32)  # (mkv, out_dim)

    seg = seg_ref[...]                 # (out_dim, H) 0/1 head-segment indicator
    inv_hd = 1.0 / head_dim

    def seg_layernorm(x, gamma, beta):
        # Per-head LayerNorm over head_dim, vectorized across every head.
        # Single fused stats matmul on stacked rows [x ; x*x] -> per-head
        # (mean, E[x^2]); one broadcast-back matmul; var = E[x^2] - mean^2.
        m_rows = x.shape[0]
        xs = jnp.concatenate([x, x * x], axis=0)                           # (2m, out_dim)
        stats_h = jnp.dot(xs, seg, preferred_element_type=jnp.float32) * inv_hd   # (2m, H)
        stats = lax.dot_general(stats_h, seg, (((1,), (1,)), ((), ())),
                                preferred_element_type=jnp.float32)        # (2m, out_dim)
        mean = stats[:m_rows]
        var = stats[m_rows:] - mean * mean
        return (x - mean) * lax.rsqrt(var + eps) * gamma + beta

    # Attention scale is already folded into gq/bq (wrapper side).
    q_ln = seg_layernorm(q, gq_ref[...], bq_ref[...]).astype(mxu_dtype)
    k_ln = seg_layernorm(k, gk_ref[...], bk_ref[...]).astype(mxu_dtype)
    v = v.astype(mxu_dtype)

    # 3-D views (leading-dim split only; lane dim untouched) for batched einsums.
    q3 = q_ln.reshape(bt, n_q, out_dim)
    k3 = k_ln.reshape(bt, n_kv, out_dim)
    v3 = v.reshape(bt, n_kv, out_dim)

    approx = jnp.dtype(mxu_dtype) != jnp.dtype(jnp.float32)

    # Heads: short static loop (<= 8).  Each head's normalized output is stored
    # into its static column slice of the VMEM scratch, so no live f32
    # accumulator is carried across the loop; the output projection below is a
    # single wide (K = out_dim) matmul.
    for h in range(num_heads):
        lo = h * head_dim
        qh = q3[:, :, lo:lo + head_dim]
        kh = k3[:, :, lo:lo + head_dim]
        vh = v3[:, :, lo:lo + head_dim]

        # Q K^T batched over the batch block (contracts the shared last dim;
        # no materialized K transpose).
        s = jnp.einsum("bqd,bkd->bqk", qh, kh,
                       preferred_element_type=jnp.float32)                 # (bt, n_q, n_kv)
        s_max = jnp.max(s, axis=-1, keepdims=True)
        p = jnp.exp(s - s_max)
        l = jnp.sum(p, axis=-1, keepdims=True)
        o = jnp.einsum("bqk,bkd->bqd", p.astype(mxu_dtype), vh,
                       preferred_element_type=jnp.float32)                 # (bt, n_q, hd)
        # Normalize after the PV matmul: (n_q, hd) work, not (n_q, n_kv).
        o = o * pl.reciprocal(l, approx=approx)

        attn_scratch[:, lo:lo + head_dim] = o.reshape(mq, head_dim).astype(mxu_dtype)

    # Single wide output projection (K = out_dim) + bias.
    y = jnp.dot(attn_scratch[...], wp_ref[...],
                preferred_element_type=jnp.float32) + bp_ref[...]
    out_ref[...] = y.reshape(bt, n_q, out_dim).astype(out_ref.dtype)


def _vmem_footprint_bytes(bt, n_q, n_kv, q_dim, kv_dim, out_dim, num_heads,
                          mxu_itemsize, out_itemsize):
    """Rough, deliberately pessimistic per-grid-step VMEM estimate (bytes)."""
    f32 = 4
    mq, mkv = bt * n_q, bt * n_kv
    total = 0
    # Pipelined (double-buffered) input / output blocks.
    total += 2 * (bt * n_q * q_dim + bt * n_kv * kv_dim) * mxu_itemsize
    total += 2 * bt * n_q * out_dim * out_itemsize
    # Weights / LN params / segment matrix (worst case: double-buffered even
    # though their block index is grid-invariant).
    total += 2 * (q_dim + 2 * kv_dim + out_dim) * out_dim * mxu_itemsize
    total += 2 * (5 * out_dim + out_dim * num_heads) * f32
    # f32 q/k/v projections + LN working set ([x; x*x], stats, normalized) + casts.
    total += (mq + 2 * mkv) * out_dim * f32
    total += 3 * (mq + mkv) * out_dim * f32
    total += (mq + mkv) * out_dim * mxu_itemsize
    # Per-head attention working set (batched over bt) + head-concat scratch.
    total += 2 * bt * n_q * n_kv * f32
    total += bt * n_q * out_dim * f32
    total += mq * out_dim * mxu_itemsize
    return total


def cross_attention(q_input, kv_input, params, *, num_heads,
                    batch_block=None, mxu_dtype=jnp.bfloat16):
    B, N_q, q_dim = q_input.shape
    _, N_kv, kv_dim = kv_input.shape
    out_dim = params["wq"].shape[0]
    head_dim = out_dim // num_heads
    scale = head_dim ** (-0.5)
    f32 = jnp.float32

    mxu_itemsize = jnp.dtype(mxu_dtype).itemsize
    out_itemsize = jnp.dtype(q_input.dtype).itemsize

    # VMEM budget from the actual device (fallback: 64 MiB = v7x per-TC, the
    # most restrictive generation).
    try:
        physical_vmem = int(pltpu.get_tpu_info().vmem_capacity_bytes)
    except Exception:
        physical_vmem = 64 * 1024 * 1024
    budget = int(0.7 * physical_vmem)

    def fp(bt_):
        return _vmem_footprint_bytes(bt_, N_q, N_kv, q_dim, kv_dim, out_dim,
                                     num_heads, mxu_itemsize, out_itemsize)

    if batch_block is None:
        divisors = [d for d in range(1, min(B, 8) + 1) if B % d == 0]
        fitting = [d for d in divisors if fp(d) <= budget]
        if not fitting:
            batch_block = 1
        else:
            # Prefer >= 2 grid steps so v7x's two TensorCores both get work.
            two_step = [d for d in fitting if B // d >= 2]
            batch_block = max(two_step) if two_step else max(fitting)
    assert B % batch_block == 0
    bt = batch_block

    vmem_limit = int(min(budget, max(32 * 1024 * 1024, int(1.25 * fp(bt)))))

    # Pre-transpose projection weights to (in_dim, out_dim) -> MXU-native layout.
    wq_t = params["wq"].T.astype(mxu_dtype)
    wk_t = params["wk"].T.astype(mxu_dtype)
    wv_t = params["wv"].T.astype(mxu_dtype)
    wp_t = params["wp"].T.astype(mxu_dtype)

    # Tile per-head LayerNorm affine params across heads (hoisted out of the
    # kernel) and fold the attention scale into the q side.
    gq = (jnp.tile(params["gq"].reshape(-1), num_heads) * scale).reshape(1, out_dim).astype(f32)
    bq = (jnp.tile(params["bq"].reshape(-1), num_heads) * scale).reshape(1, out_dim).astype(f32)
    gk = jnp.tile(params["gk"].reshape(-1), num_heads).reshape(1, out_dim).astype(f32)
    bk = jnp.tile(params["bk"].reshape(-1), num_heads).reshape(1, out_dim).astype(f32)
    bp = params["bp"].reshape(1, out_dim).astype(f32)

    # 0/1 head-segment indicator for the vectorized per-head LayerNorm.
    seg = jnp.repeat(jnp.eye(num_heads, dtype=f32), head_dim, axis=0)   # (out_dim, H)

    q_in = q_input.astype(mxu_dtype)
    kv_in = kv_input.astype(mxu_dtype)

    kernel = functools.partial(cross_attention_kernel,
                               num_heads=num_heads, head_dim=head_dim,
                               mxu_dtype=mxu_dtype)

    def full(a):
        nd = a.ndim
        return pl.BlockSpec(a.shape, lambda i, _nd=nd: (0,) * _nd)

    return pl.pallas_call(
        kernel,
        out_shape=jax.ShapeDtypeStruct((B, N_q, out_dim), q_input.dtype),
        grid_spec=pltpu.PrefetchScalarGridSpec(
            num_scalar_prefetch=0,
            grid=(B // bt,),
            in_specs=[
                pl.BlockSpec((bt, N_q, q_dim), lambda i: (i, 0, 0)),
                pl.BlockSpec((bt, N_kv, kv_dim), lambda i: (i, 0, 0)),
                full(wq_t), full(wk_t), full(wv_t),
                full(gq), full(bq), full(gk), full(bk),
                full(seg), full(wp_t), full(bp),
            ],
            out_specs=pl.BlockSpec((bt, N_q, out_dim), lambda i: (i, 0, 0)),
            scratch_shapes=[pltpu.VMEM((bt * N_q, out_dim), mxu_dtype)],
        ),
        compiler_params=pltpu.CompilerParams(
            dimension_semantics=("parallel",),
            vmem_limit_bytes=vmem_limit),
    )(q_in, kv_in, wq_t, wk_t, wv_t, gq, bq, gk, bk, seg, wp_t, bp)


def cross_attention_ref(q_input, kv_input, params, *, num_heads):
    # Pure-JAX reference mirroring the PyTorch forward (inference: dropout off).
    B, N_q, _ = q_input.shape
    _, N_kv, _ = kv_input.shape
    out_dim = params["wq"].shape[0]
    hd = out_dim // num_heads
    scale = hd ** (-0.5)

    def ln(x, g, b, eps=1e-5):
        mu = x.mean(-1, keepdims=True)
        var = ((x - mu) ** 2).mean(-1, keepdims=True)
        return (x - mu) / jnp.sqrt(var + eps) * g + b

    q = (q_input @ params["wq"].T).reshape(B, N_q, num_heads, hd).transpose(0, 2, 1, 3)
    k = (kv_input @ params["wk"].T).reshape(B, N_kv, num_heads, hd).transpose(0, 2, 1, 3)
    v = (kv_input @ params["wv"].T).reshape(B, N_kv, num_heads, hd).transpose(0, 2, 1, 3)
    q = ln(q, params["gq"][0], params["bq"][0])
    k = ln(k, params["gk"][0], params["bk"][0])
    s = jnp.einsum("bhqd,bhkd->bhqk", q, k) * scale
    p = jax.nn.softmax(s, axis=-1)
    o = jnp.einsum("bhqk,bhkd->bhqd", p, v)
    x = o.transpose(0, 2, 1, 3).reshape(B, N_q, out_dim)
    return x @ params["wp"].T + params["bp"][0]


if __name__ == "__main__":
    # Small shapes consistent with the module (scaled down from 512-dim),
    # but lane-dense: out_dim = 128 so output stores are full-lane writes.
    B, N_q, N_kv = 2, 8, 16
    q_dim = kv_dim = out_dim = 128
    num_heads = 8
    head_dim = out_dim // num_heads

    key = jax.random.PRNGKey(0)
    ks = jax.random.split(key, 12)
    f32 = jnp.float32

    q_input = jax.random.normal(ks[0], (B, N_q, q_dim), dtype=f32)
    kv_input = jax.random.normal(ks[1], (B, N_kv, kv_dim), dtype=f32)

    params = {
        "wq": 0.05 * jax.random.normal(ks[2], (out_dim, q_dim), dtype=f32),
        "wk": 0.05 * jax.random.normal(ks[3], (out_dim, kv_dim), dtype=f32),
        "wv": 0.05 * jax.random.normal(ks[4], (out_dim, kv_dim), dtype=f32),
        # Per-head LayerNorm params (shared across heads), stored as (1, head_dim).
        "gq": (1.0 + 0.1 * jax.random.normal(ks[7], (1, head_dim), dtype=f32)),
        "bq": 0.05 * jax.random.normal(ks[8], (1, head_dim), dtype=f32),
        "gk": (1.0 + 0.1 * jax.random.normal(ks[9], (1, head_dim), dtype=f32)),
        "bk": 0.05 * jax.random.normal(ks[10], (1, head_dim), dtype=f32),
        "wp": 0.05 * jax.random.normal(ks[5], (out_dim, out_dim), dtype=f32),
        "bp": 0.01 * jax.random.normal(ks[6], (1, out_dim), dtype=f32),
    }

    ref = cross_attention_ref(q_input, kv_input, params, num_heads=num_heads)

    # Default path: bf16 MXU operands, f32 accumulation / LN / softmax stats.
    # (Inputs are bf16-rounded too, so tolerance vs. the f32 reference is loose.)
    out_bf16 = jax.block_until_ready(
        cross_attention(q_input, kv_input, params, num_heads=num_heads))
    assert out_bf16.shape == (B, N_q, out_dim)
    assert jnp.allclose(out_bf16, ref, atol=5e-2, rtol=5e-2), "bf16 path mismatch"

    # f32 MXU path (test-only mode): must match the f32 reference tightly.
    out_f32 = jax.block_until_ready(
        cross_attention(q_input, kv_input, params, num_heads=num_heads,
                        mxu_dtype=jnp.float32))
    assert out_f32.shape == (B, N_q, out_dim)
    assert jnp.allclose(out_f32, ref, atol=1e-4, rtol=1e-4), "f32 path mismatch"

    print("KERNEL_OK")
</pallas_src>

<mosaic_0001>
module attributes {stable_mosaic.version = 11 : i64} {
  func.func @cross_attention_kernel(%arg0: i32, %arg1: memref<1x8x128xbf16, #tpu.memory_space<vmem>>, %arg2: memref<1x16x128xbf16, #tpu.memory_space<vmem>>, %arg3: memref<128x128xbf16, #tpu.memory_space<vmem>>, %arg4: memref<128x128xbf16, #tpu.memory_space<vmem>>, %arg5: memref<128x128xbf16, #tpu.memory_space<vmem>>, %arg6: memref<1x128xf32, #tpu.memory_space<vmem>>, %arg7: memref<1x128xf32, #tpu.memory_space<vmem>>, %arg8: memref<1x128xf32, #tpu.memory_space<vmem>>, %arg9: memref<1x128xf32, #tpu.memory_space<vmem>>, %arg10: memref<128x8xf32, #tpu.memory_space<vmem>>, %arg11: memref<128x128xbf16, #tpu.memory_space<vmem>>, %arg12: memref<1x128xf32, #tpu.memory_space<vmem>>, %arg13: memref<1x8x128xf32, #tpu.memory_space<vmem>>, %arg14: memref<8x128xbf16, #tpu.memory_space<vmem>>) attributes {dimension_semantics = [#tpu.dimension_semantics<parallel>], iteration_bounds = array<i64: 2>, scalar_prefetch = 0 : i64, scratch_operands = 1 : i64, tpu.core_type = #tpu.core_type<tc>, window_params = [{transform_indices = @transform_0, window_bounds = array<i64: 1, 8, 128>}, {transform_indices = @transform_1, window_bounds = array<i64: 1, 16, 128>}, {pipeline_mode = #tpu.pipeline_mode<synchronous>, transform_indices = @transform_2, window_bounds = array<i64: 128, 128>}, {pipeline_mode = #tpu.pipeline_mode<synchronous>, transform_indices = @transform_3, window_bounds = array<i64: 128, 128>}, {pipeline_mode = #tpu.pipeline_mode<synchronous>, transform_indices = @transform_4, window_bounds = array<i64: 128, 128>}, {pipeline_mode = #tpu.pipeline_mode<synchronous>, transform_indices = @transform_5, window_bounds = array<i64: 1, 128>}, {pipeline_mode = #tpu.pipeline_mode<synchronous>, transform_indices = @transform_6, window_bounds = array<i64: 1, 128>}, {pipeline_mode = #tpu.pipeline_mode<synchronous>, transform_indices = @transform_7, window_bounds = array<i64: 1, 128>}, {pipeline_mode = #tpu.pipeline_mode<synchronous>, transform_indices = @transform_8, window_bounds = array<i64: 1, 128>}, {pipeline_mode = #tpu.pipeline_mode<synchronous>, transform_indices = @transform_9, window_bounds = array<i64: 128, 8>}, {pipeline_mode = #tpu.pipeline_mode<synchronous>, transform_indices = @transform_10, window_bounds = array<i64: 128, 128>}, {pipeline_mode = #tpu.pipeline_mode<synchronous>, transform_indices = @transform_11, window_bounds = array<i64: 1, 128>}, {transform_indices = @transform_12, window_bounds = array<i64: 1, 8, 128>}]} {
    %c0 = arith.constant 0 : index
    %c0_0 = arith.constant 0 : index
    %c0_1 = arith.constant 0 : index
    %0 = vector.load %arg1[%c0, %c0_0, %c0_1] : memref<1x8x128xbf16, #tpu.memory_space<vmem>>, vector<1x8x128xbf16>
    %1 = vector.shape_cast %0 : vector<1x8x128xbf16> to vector<8x128xbf16>
    %c0_2 = arith.constant 0 : index
    %c0_3 = arith.constant 0 : index
    %c0_4 = arith.constant 0 : index
    %2 = vector.load %arg2[%c0_2, %c0_3, %c0_4] : memref<1x16x128xbf16, #tpu.memory_space<vmem>>, vector<1x16x128xbf16>
    %3 = vector.shape_cast %2 : vector<1x16x128xbf16> to vector<16x128xbf16>
    %c0_5 = arith.constant 0 : index
    %c0_6 = arith.constant 0 : index
    %4 = vector.load %arg3[%c0_5, %c0_6] : memref<128x128xbf16, #tpu.memory_space<vmem>>, vector<128x128xbf16>
    %cst = arith.constant dense<0.000000e+00> : vector<8x128xf32>
    %5 = tpu.matmul %1, %4, %cst {dimension_numbers = #tpu.dot_dimension_numbers<[1], [0], [0], [1], [0, 0, 1, 1], [], []>} : vector<8x128xbf16>, vector<128x128xbf16>, vector<8x128xf32> -> vector<8x128xf32>
    %c0_7 = arith.constant 0 : index
    %c0_8 = arith.constant 0 : index
    %6 = vector.load %arg4[%c0_7, %c0_8] : memref<128x128xbf16, #tpu.memory_space<vmem>>, vector<128x128xbf16>
    %cst_9 = arith.constant dense<0.000000e+00> : vector<16x128xf32>
    %7 = tpu.matmul %3, %6, %cst_9 {dimension_numbers = #tpu.dot_dimension_numbers<[1], [0], [0], [1], [0, 0, 1, 1], [], []>} : vector<16x128xbf16>, vector<128x128xbf16>, vector<16x128xf32> -> vector<16x128xf32>
    %c0_10 = arith.constant 0 : index
    %c0_11 = arith.constant 0 : index
    %8 = vector.load %arg5[%c0_10, %c0_11] : memref<128x128xbf16, #tpu.memory_space<vmem>>, vector<128x128xbf16>
    %cst_12 = arith.constant dense<0.000000e+00> : vector<16x128xf32>
    %9 = tpu.matmul %3, %8, %cst_12 {dimension_numbers = #tpu.dot_dimension_numbers<[1], [0], [0], [1], [0, 0, 1, 1], [], []>} : vector<16x128xbf16>, vector<128x128xbf16>, vector<16x128xf32> -> vector<16x128xf32>
    %c0_13 = arith.constant 0 : index
    %c0_14 = arith.constant 0 : index
    %10 = vector.load %arg10[%c0_13, %c0_14] : memref<128x8xf32, #tpu.memory_space<vmem>>, vector<128x8xf32>
    %c0_15 = arith.constant 0 : index
    %c0_16 = arith.constant 0 : index
    %11 = vector.load %arg6[%c0_15, %c0_16] : memref<1x128xf32, #tpu.memory_space<vmem>>, vector<1x128xf32>
    %c0_17 = arith.constant 0 : index
    %c0_18 = arith.constant 0 : index
    %12 = vector.load %arg7[%c0_17, %c0_18] : memref<1x128xf32, #tpu.memory_space<vmem>>, vector<1x128xf32>
    %13 = arith.mulf %5, %5 : vector<8x128xf32>
    %14 = tpu.concatenate %5, %13 in 0 : vector<8x128xf32>, vector<8x128xf32> -> vector<16x128xf32>
    %cst_19 = arith.constant dense<0.000000e+00> : vector<16x8xf32>
    %15 = tpu.matmul %14, %10, %cst_19 {dimension_numbers = #tpu.dot_dimension_numbers<[1], [0], [0], [1], [0, 0, 1, 1], [], []>} : vector<16x128xf32>, vector<128x8xf32>, vector<16x8xf32> -> vector<16x8xf32>
    %cst_20 = arith.constant 6.250000e-02 : f32
    %16 = vector.broadcast %cst_20 : f32 to vector<16x8xf32>
    %17 = arith.mulf %15, %16 : vector<16x8xf32>
    %cst_21 = arith.constant dense<0.000000e+00> : vector<16x128xf32>
    %18 = tpu.matmul %17, %10, %cst_21 {dimension_numbers = #tpu.dot_dimension_numbers<[1], [1], [0], [0], [0, 0, 1, 0], [], []>} : vector<16x8xf32>, vector<128x8xf32>, vector<16x128xf32> -> vector<16x128xf32>
    %19 = vector.extract_strided_slice %18 {offsets = [0, 0], sizes = [8, 128], strides = [1, 1]} : vector<16x128xf32> to vector<8x128xf32>
    %20 = vector.extract_strided_slice %18 {offsets = [8, 0], sizes = [8, 128], strides = [1, 1]} : vector<16x128xf32> to vector<8x128xf32>
    %21 = arith.mulf %19, %19 : vector<8x128xf32>
    %22 = arith.subf %20, %21 : vector<8x128xf32>
    %23 = arith.subf %5, %19 : vector<8x128xf32>
    %cst_22 = arith.constant 9.99999974E-6 : f32
    %24 = vector.broadcast %cst_22 : f32 to vector<8x128xf32>
    %25 = arith.addf %22, %24 : vector<8x128xf32>
    %26 = math.rsqrt %25 : vector<8x128xf32>
    %27 = arith.mulf %23, %26 : vector<8x128xf32>
    %28 = vector.broadcast %11 : vector<1x128xf32> to vector<8x128xf32>
    %29 = arith.mulf %27, %28 : vector<8x128xf32>
    %30 = vector.broadcast %12 : vector<1x128xf32> to vector<8x128xf32>
    %31 = arith.addf %29, %30 : vector<8x128xf32>
    %32 = arith.truncf %31 : vector<8x128xf32> to vector<8x128xbf16>
    %c0_23 = arith.constant 0 : index
    %c0_24 = arith.constant 0 : index
    %33 = vector.load %arg8[%c0_23, %c0_24] : memref<1x128xf32, #tpu.memory_space<vmem>>, vector<1x128xf32>
    %c0_25 = arith.constant 0 : index
    %c0_26 = arith.constant 0 : index
    %34 = vector.load %arg9[%c0_25, %c0_26] : memref<1x128xf32, #tpu.memory_space<vmem>>, vector<1x128xf32>
    %35 = arith.mulf %7, %7 : vector<16x128xf32>
    %36 = tpu.concatenate %7, %35 in 0 : vector<16x128xf32>, vector<16x128xf32> -> vector<32x128xf32>
    %cst_27 = arith.constant dense<0.000000e+00> : vector<32x8xf32>
    %37 = tpu.matmul %36, %10, %cst_27 {dimension_numbers = #tpu.dot_dimension_numbers<[1], [0], [0], [1], [0, 0, 1, 1], [], []>} : vector<32x128xf32>, vector<128x8xf32>, vector<32x8xf32> -> vector<32x8xf32>
    %cst_28 = arith.constant 6.250000e-02 : f32
    %38 = vector.broadcast %cst_28 : f32 to vector<32x8xf32>
    %39 = arith.mulf %37, %38 : vector<32x8xf32>
    %cst_29 = arith.constant dense<0.000000e+00> : vector<32x128xf32>
    %40 = tpu.matmul %39, %10, %cst_29 {dimension_numbers = #tpu.dot_dimension_numbers<[1], [1], [0], [0], [0, 0, 1, 0], [], []>} : vector<32x8xf32>, vector<128x8xf32>, vector<32x128xf32> -> vector<32x128xf32>
    %41 = vector.extract_strided_slice %40 {offsets = [0, 0], sizes = [16, 128], strides = [1, 1]} : vector<32x128xf32> to vector<16x128xf32>
    %42 = vector.extract_strided_slice %40 {offsets = [16, 0], sizes = [16, 128], strides = [1, 1]} : vector<32x128xf32> to vector<16x128xf32>
    %43 = arith.mulf %41, %41 : vector<16x128xf32>
    %44 = arith.subf %42, %43 : vector<16x128xf32>
    %45 = arith.subf %7, %41 : vector<16x128xf32>
    %cst_30 = arith.constant 9.99999974E-6 : f32
    %46 = vector.broadcast %cst_30 : f32 to vector<16x128xf32>
    %47 = arith.addf %44, %46 : vector<16x128xf32>
    %48 = math.rsqrt %47 : vector<16x128xf32>
    %49 = arith.mulf %45, %48 : vector<16x128xf32>
    %50 = vector.broadcast %33 : vector<1x128xf32> to vector<16x128xf32>
    %51 = arith.mulf %49, %50 : vector<16x128xf32>
    %52 = vector.broadcast %34 : vector<1x128xf32> to vector<16x128xf32>
    %53 = arith.addf %51, %52 : vector<16x128xf32>
    %54 = arith.truncf %53 : vector<16x128xf32> to vector<16x128xbf16>
    %55 = arith.truncf %9 : vector<16x128xf32> to vector<16x128xbf16>
    %56 = vector.shape_cast %32 : vector<8x128xbf16> to vector<1x8x128xbf16>
    %57 = vector.shape_cast %54 : vector<16x128xbf16> to vector<1x16x128xbf16>
    %58 = vector.shape_cast %55 : vector<16x128xbf16> to vector<1x16x128xbf16>
    %59 = vector.extract_strided_slice %56 {offsets = [0, 0, 0], sizes = [1, 8, 16], strides = [1, 1, 1]} : vector<1x8x128xbf16> to vector<1x8x16xbf16>
    %60 = vector.extract_strided_slice %57 {offsets = [0, 0, 0], sizes = [1, 16, 16], strides = [1, 1, 1]} : vector<1x16x128xbf16> to vector<1x16x16xbf16>
    %61 = vector.extract_strided_slice %58 {offsets = [0, 0, 0], sizes = [1, 16, 16], strides = [1, 1, 1]} : vector<1x16x128xbf16> to vector<1x16x16xbf16>
    "tpu.trace_start"() <{level = 10 : i32, message = "bqd,bkd->bqk"}> : () -> ()
    %cst_31 = arith.constant dense<0.000000e+00> : vector<1x8x16xf32>
    %62 = tpu.matmul %59, %60, %cst_31 {dimension_numbers = #tpu.dot_dimension_numbers<[2], [2], [1], [1], [0, 0, 0, 1, 1, 1], [0], [0]>} : vector<1x8x16xbf16>, vector<1x16x16xbf16>, vector<1x8x16xf32> -> vector<1x8x16xf32>
    "tpu.trace_stop"() : () -> ()
    %cst_32 = arith.constant dense<0xFF800000> : vector<1x8xf32>
    %63 = vector.multi_reduction <maximumf>, %62, %cst_32 [2] : vector<1x8x16xf32> to vector<1x8xf32>
    %64 = vector.shape_cast %63 : vector<1x8xf32> to vector<1x8x1xf32>
    %65 = vector.broadcast %64 : vector<1x8x1xf32> to vector<1x8x16xf32>
    %66 = arith.subf %62, %65 : vector<1x8x16xf32>
    %67 = math.exp %66 : vector<1x8x16xf32>
    %cst_33 = arith.constant dense<0.000000e+00> : vector<1x8xf32>
    %68 = vector.multi_reduction <add>, %67, %cst_33 [2] : vector<1x8x16xf32> to vector<1x8xf32>
    %69 = vector.shape_cast %68 : vector<1x8xf32> to vector<1x8x1xf32>
    %70 = arith.truncf %67 : vector<1x8x16xf32> to vector<1x8x16xbf16>
    "tpu.trace_start"() <{level = 10 : i32, message = "bqk,bkd->bqd"}> : () -> ()
    %cst_34 = arith.constant dense<0.000000e+00> : vector<1x8x16xf32>
    %71 = tpu.matmul %70, %61, %cst_34 {dimension_numbers = #tpu.dot_dimension_numbers<[2], [1], [1], [2], [0, 0, 0, 1, 1, 2], [0], [0]>} : vector<1x8x16xbf16>, vector<1x16x16xbf16>, vector<1x8x16xf32> -> vector<1x8x16xf32>
    "tpu.trace_stop"() : () -> ()
    %72 = tpu.reciprocal %69 {approx = true} : vector<1x8x1xf32> -> vector<1x8x1xf32>
    %73 = vector.broadcast %72 : vector<1x8x1xf32> to vector<1x8x16xf32>
    %74 = arith.mulf %71, %73 : vector<1x8x16xf32>
    %75 = vector.shape_cast %74 : vector<1x8x16xf32> to vector<8x16xf32>
    %76 = arith.truncf %75 : vector<8x16xf32> to vector<8x16xbf16>
    %c0_35 = arith.constant 0 : index
    %c0_36 = arith.constant 0 : index
    %77 = vector.load %arg14[%c0_35, %c0_36] : memref<8x128xbf16, #tpu.memory_space<vmem>>, vector<8x16xbf16>
    tpu.vector_store %arg14[%c0_35, %c0_36], %76 {strides = array<i32>} : memref<8x128xbf16, #tpu.memory_space<vmem>>, vector<8x16xbf16>,
    %78 = vector.extract_strided_slice %56 {offsets = [0, 0, 16], sizes = [1, 8, 16], strides = [1, 1, 1]} : vector<1x8x128xbf16> to vector<1x8x16xbf16>
    %79 = vector.extract_strided_slice %57 {offsets = [0, 0, 16], sizes = [1, 16, 16], strides = [1, 1, 1]} : vector<1x16x128xbf16> to vector<1x16x16xbf16>
    %80 = vector.extract_strided_slice %58 {offsets = [0, 0, 16], sizes = [1, 16, 16], strides = [1, 1, 1]} : vector<1x16x128xbf16> to vector<1x16x16xbf16>
    "tpu.trace_start"() <{level = 10 : i32, message = "bqd,bkd->bqk"}> : () -> ()
    %cst_37 = arith.constant dense<0.000000e+00> : vector<1x8x16xf32>
    %81 = tpu.matmul %78, %79, %cst_37 {dimension_numbers = #tpu.dot_dimension_numbers<[2], [2], [1], [1], [0, 0, 0, 1, 1, 1], [0], [0]>} : vector<1x8x16xbf16>, vector<1x16x16xbf16>, vector<1x8x16xf32> -> vector<1x8x16xf32>
    "tpu.trace_stop"() : () -> ()
    %cst_38 = arith.constant dense<0xFF800000> : vector<1x8xf32>
    %82 = vector.multi_reduction <maximumf>, %81, %cst_38 [2] : vector<1x8x16xf32> to vector<1x8xf32>
    %83 = vector.shape_cast %82 : vector<1x8xf32> to vector<1x8x1xf32>
    %84 = vector.broadcast %83 : vector<1x8x1xf32> to vector<1x8x16xf32>
    %85 = arith.subf %81, %84 : vector<1x8x16xf32>
    %86 = math.exp %85 : vector<1x8x16xf32>
    %cst_39 = arith.constant dense<0.000000e+00> : vector<1x8xf32>
    %87 = vector.multi_reduction <add>, %86, %cst_39 [2] : vector<1x8x16xf32> to vector<1x8xf32>
    %88 = vector.shape_cast %87 : vector<1x8xf32> to vector<1x8x1xf32>
    %89 = arith.truncf %86 : vector<1x8x16xf32> to vector<1x8x16xbf16>
    "tpu.trace_start"() <{level = 10 : i32, message = "bqk,bkd->bqd"}> : () -> ()
    %cst_40 = arith.constant dense<0.000000e+00> : vector<1x8x16xf32>
    %90 = tpu.matmul %89, %80, %cst_40 {dimension_numbers = #tpu.dot_dimension_numbers<[2], [1], [1], [2], [0, 0, 0, 1, 1, 2], [0], [0]>} : vector<1x8x16xbf16>, vector<1x16x16xbf16>, vector<1x8x16xf32> -> vector<1x8x16xf32>
    "tpu.trace_stop"() : () -> ()
    %91 = tpu.reciprocal %88 {approx = true} : vector<1x8x1xf32> -> vector<1x8x1xf32>
    %92 = vector.broadcast %91 : vector<1x8x1xf32> to vector<1x8x16xf32>
    %93 = arith.mulf %90, %92 : vector<1x8x16xf32>
    %94 = vector.shape_cast %93 : vector<1x8x16xf32> to vector<8x16xf32>
    %95 = arith.truncf %94 : vector<8x16xf32> to vector<8x16xbf16>
    %c0_41 = arith.constant 0 : index
    %c16 = arith.constant 16 : index
    %96 = vector.load %arg14[%c0_41, %c16] : memref<8x128xbf16, #tpu.memory_space<vmem>>, vector<8x16xbf16>
    tpu.vector_store %arg14[%c0_41, %c16], %95 {strides = array<i32>} : memref<8x128xbf16, #tpu.memory_space<vmem>>, vector<8x16xbf16>,
    %97 = vector.extract_strided_slice %56 {offsets = [0, 0, 32], sizes = [1, 8, 16], strides = [1, 1, 1]} : vector<1x8x128xbf16> to vector<1x8x16xbf16>
    %98 = vector.extract_strided_slice %57 {offsets = [0, 0, 32], sizes = [1, 16, 16], strides = [1, 1, 1]} : vector<1x16x128xbf16> to vector<1x16x16xbf16>
    %99 = vector.extract_strided_slice %58 {offsets = [0, 0, 32], sizes = [1, 16, 16], strides = [1, 1, 1]} : vector<1x16x128xbf16> to vector<1x16x16xbf16>
    "tpu.trace_start"() <{level = 10 : i32, message = "bqd,bkd->bqk"}> : () -> ()
    %cst_42 = arith.constant dense<0.000000e+00> : vector<1x8x16xf32>
    %100 = tpu.matmul %97, %98, %cst_42 {dimension_numbers = #tpu.dot_dimension_numbers<[2], [2], [1], [1], [0, 0, 0, 1, 1, 1], [0], [0]>} : vector<1x8x16xbf16>, vector<1x16x16xbf16>, vector<1x8x16xf32> -> vector<1x8x16xf32>
    "tpu.trace_stop"() : () -> ()
    %cst_43 = arith.constant dense<0xFF800000> : vector<1x8xf32>
    %101 = vector.multi_reduction <maximumf>, %100, %cst_43 [2] : vector<1x8x16xf32> to vector<1x8xf32>
    %102 = vector.shape_cast %101 : vector<1x8xf32> to vector<1x8x1xf32>
    %103 = vector.broadcast %102 : vector<1x8x1xf32> to vector<1x8x16xf32>
    %104 = arith.subf %100, %103 : vector<1x8x16xf32>
    %105 = math.exp %104 : vector<1x8x16xf32>
    %cst_44 = arith.constant dense<0.000000e+00> : vector<1x8xf32>
    %106 = vector.multi_reduction <add>, %105, %cst_44 [2] : vector<1x8x16xf32> to vector<1x8xf32>
    %107 = vector.shape_cast %106 : vector<1x8xf32> to vector<1x8x1xf32>
    %108 = arith.truncf %105 : vector<1x8x16xf32> to vector<1x8x16xbf16>
    "tpu.trace_start"() <{level = 10 : i32, message = "bqk,bkd->bqd"}> : () -> ()
    %cst_45 = arith.constant dense<0.000000e+00> : vector<1x8x16xf32>
    %109 = tpu.matmul %108, %99, %cst_45 {dimension_numbers = #tpu.dot_dimension_numbers<[2], [1], [1], [2], [0, 0, 0, 1, 1, 2], [0], [0]>} : vector<1x8x16xbf16>, vector<1x16x16xbf16>, vector<1x8x16xf32> -> vector<1x8x16xf32>
    "tpu.trace_stop"() : () -> ()
    %110 = tpu.reciprocal %107 {approx = true} : vector<1x8x1xf32> -> vector<1x8x1xf32>
    %111 = vector.broadcast %110 : vector<1x8x1xf32> to vector<1x8x16xf32>
    %112 = arith.mulf %109, %111 : vector<1x8x16xf32>
    %113 = vector.shape_cast %112 : vector<1x8x16xf32> to vector<8x16xf32>
    %114 = arith.truncf %113 : vector<8x16xf32> to vector<8x16xbf16>
    %c0_46 = arith.constant 0 : index
    %c32 = arith.constant 32 : index
    %115 = vector.load %arg14[%c0_46, %c32] : memref<8x128xbf16, #tpu.memory_space<vmem>>, vector<8x16xbf16>
    tpu.vector_store %arg14[%c0_46, %c32], %114 {strides = array<i32>} : memref<8x128xbf16, #tpu.memory_space<vmem>>, vector<8x16xbf16>,
    %116 = vector.extract_strided_slice %56 {offsets = [0, 0, 48], sizes = [1, 8, 16], strides = [1, 1, 1]} : vector<1x8x128xbf16> to vector<1x8x16xbf16>
    %117 = vector.extract_strided_slice %57 {offsets = [0, 0, 48], sizes = [1, 16, 16], strides = [1, 1, 1]} : vector<1x16x128xbf16> to vector<1x16x16xbf16>
    %118 = vector.extract_strided_slice %58 {offsets = [0, 0, 48], sizes = [1, 16, 16], strides = [1, 1, 1]} : vector<1x16x128xbf16> to vector<1x16x16xbf16>
    "tpu.trace_start"() <{level = 10 : i32, message = "bqd,bkd->bqk"}> : () -> ()
    %cst_47 = arith.constant dense<0.000000e+00> : vector<1x8x16xf32>
    %119 = tpu.matmul %116, %117, %cst_47 {dimension_numbers = #tpu.dot_dimension_numbers<[2], [2], [1], [1], [0, 0, 0, 1, 1, 1], [0], [0]>} : vector<1x8x16xbf16>, vector<1x16x16xbf16>, vector<1x8x16xf32> -> vector<1x8x16xf32>
    "tpu.trace_stop"() : () -> ()
    %cst_48 = arith.constant dense<0xFF800000> : vector<1x8xf32>
    %120 = vector.multi_reduction <maximumf>, %119, %cst_48 [2] : vector<1x8x16xf32> to vector<1x8xf32>
    %121 = vector.shape_cast %120 : vector<1x8xf32> to vector<1x8x1xf32>
    %122 = vector.broadcast %121 : vector<1x8x1xf32> to vector<1x8x16xf32>
    %123 = arith.subf %119, %122 : vector<1x8x16xf32>
    %124 = math.exp %123 : vector<1x8x16xf32>
    %cst_49 = arith.constant dense<0.000000e+00> : vector<1x8xf32>
    %125 = vector.multi_reduction <add>, %124, %cst_49 [2] : vector<1x8x16xf32> to vector<1x8xf32>
    %126 = vector.shape_cast %125 : vector<1x8xf32> to vector<1x8x1xf32>
    %127 = arith.truncf %124 : vector<1x8x16xf32> to vector<1x8x16xbf16>
    "tpu.trace_start"() <{level = 10 : i32, message = "bqk,bkd->bqd"}> : () -> ()
    %cst_50 = arith.constant dense<0.000000e+00> : vector<1x8x16xf32>
    %128 = tpu.matmul %127, %118, %cst_50 {dimension_numbers = #tpu.dot_dimension_numbers<[2], [1], [1], [2], [0, 0, 0, 1, 1, 2], [0], [0]>} : vector<1x8x16xbf16>, vector<1x16x16xbf16>, vector<1x8x16xf32> -> vector<1x8x16xf32>
    "tpu.trace_stop"() : () -> ()
    %129 = tpu.reciprocal %126 {approx = true} : vector<1x8x1xf32> -> vector<1x8x1xf32>
    %130 = vector.broadcast %129 : vector<1x8x1xf32> to vector<1x8x16xf32>
    %131 = arith.mulf %128, %130 : vector<1x8x16xf32>
    %132 = vector.shape_cast %131 : vector<1x8x16xf32> to vector<8x16xf32>
    %133 = arith.truncf %132 : vector<8x16xf32> to vector<8x16xbf16>
    %c0_51 = arith.constant 0 : index
    %c48 = arith.constant 48 : index
    %134 = vector.load %arg14[%c0_51, %c48] : memref<8x128xbf16, #tpu.memory_space<vmem>>, vector<8x16xbf16>
    tpu.vector_store %arg14[%c0_51, %c48], %133 {strides = array<i32>} : memref<8x128xbf16, #tpu.memory_space<vmem>>, vector<8x16xbf16>,
    %135 = vector.extract_strided_slice %56 {offsets = [0, 0, 64], sizes = [1, 8, 16], strides = [1, 1, 1]} : vector<1x8x128xbf16> to vector<1x8x16xbf16>
    %136 = vector.extract_strided_slice %57 {offsets = [0, 0, 64], sizes = [1, 16, 16], strides = [1, 1, 1]} : vector<1x16x128xbf16> to vector<1x16x16xbf16>
    %137 = vector.extract_strided_slice %58 {offsets = [0, 0, 64], sizes = [1, 16, 16], strides = [1, 1, 1]} : vector<1x16x128xbf16> to vector<1x16x16xbf16>
    "tpu.trace_start"() <{level = 10 : i32, message = "bqd,bkd->bqk"}> : () -> ()
    %cst_52 = arith.constant dense<0.000000e+00> : vector<1x8x16xf32>
    %138 = tpu.matmul %135, %136, %cst_52 {dimension_numbers = #tpu.dot_dimension_numbers<[2], [2], [1], [1], [0, 0, 0, 1, 1, 1], [0], [0]>} : vector<1x8x16xbf16>, vector<1x16x16xbf16>, vector<1x8x16xf32> -> vector<1x8x16xf32>
    "tpu.trace_stop"() : () -> ()
    %cst_53 = arith.constant dense<0xFF800000> : vector<1x8xf32>
    %139 = vector.multi_reduction <maximumf>, %138, %cst_53 [2] : vector<1x8x16xf32> to vector<1x8xf32>
    %140 = vector.shape_cast %139 : vector<1x8xf32> to vector<1x8x1xf32>
    %141 = vector.broadcast %140 : vector<1x8x1xf32> to vector<1x8x16xf32>
    %142 = arith.subf %138, %141 : vector<1x8x16xf32>
    %143 = math.exp %142 : vector<1x8x16xf32>
    %cst_54 = arith.constant dense<0.000000e+00> : vector<1x8xf32>
    %144 = vector.multi_reduction <add>, %143, %cst_54 [2] : vector<1x8x16xf32> to vector<1x8xf32>
    %145 = vector.shape_cast %144 : vector<1x8xf32> to vector<1x8x1xf32>
    %146 = arith.truncf %143 : vector<1x8x16xf32> to vector<1x8x16xbf16>
    "tpu.trace_start"() <{level = 10 : i32, message = "bqk,bkd->bqd"}> : () -> ()
    %cst_55 = arith.constant dense<0.000000e+00> : vector<1x8x16xf32>
    %147 = tpu.matmul %146, %137, %cst_55 {dimension_numbers = #tpu.dot_dimension_numbers<[2], [1], [1], [2], [0, 0, 0, 1, 1, 2], [0], [0]>} : vector<1x8x16xbf16>, vector<1x16x16xbf16>, vector<1x8x16xf32> -> vector<1x8x16xf32>
    "tpu.trace_stop"() : () -> ()
    %148 = tpu.reciprocal %145 {approx = true} : vector<1x8x1xf32> -> vector<1x8x1xf32>
    %149 = vector.broadcast %148 : vector<1x8x1xf32> to vector<1x8x16xf32>
    %150 = arith.mulf %147, %149 : vector<1x8x16xf32>
    %151 = vector.shape_cast %150 : vector<1x8x16xf32> to vector<8x16xf32>
    %152 = arith.truncf %151 : vector<8x16xf32> to vector<8x16xbf16>
    %c0_56 = arith.constant 0 : index
    %c64 = arith.constant 64 : index
    %153 = vector.load %arg14[%c0_56, %c64] : memref<8x128xbf16, #tpu.memory_space<vmem>>, vector<8x16xbf16>
    tpu.vector_store %arg14[%c0_56, %c64], %152 {strides = array<i32>} : memref<8x128xbf16, #tpu.memory_space<vmem>>, vector<8x16xbf16>,
    %154 = vector.extract_strided_slice %56 {offsets = [0, 0, 80], sizes = [1, 8, 16], strides = [1, 1, 1]} : vector<1x8x128xbf16> to vector<1x8x16xbf16>
    %155 = vector.extract_strided_slice %57 {offsets = [0, 0, 80], sizes = [1, 16, 16], strides = [1, 1, 1]} : vector<1x16x128xbf16> to vector<1x16x16xbf16>
    %156 = vector.extract_strided_slice %58 {offsets = [0, 0, 80], sizes = [1, 16, 16], strides = [1, 1, 1]} : vector<1x16x128xbf16> to vector<1x16x16xbf16>
    "tpu.trace_start"() <{level = 10 : i32, message = "bqd,bkd->bqk"}> : () -> ()
    %cst_57 = arith.constant dense<0.000000e+00> : vector<1x8x16xf32>
    %157 = tpu.matmul %154, %155, %cst_57 {dimension_numbers = #tpu.dot_dimension_numbers<[2], [2], [1], [1], [0, 0, 0, 1, 1, 1], [0], [0]>} : vector<1x8x16xbf16>, vector<1x16x16xbf16>, vector<1x8x16xf32> -> vector<1x8x16xf32>
    "tpu.trace_stop"() : () -> ()
    %cst_58 = arith.constant dense<0xFF800000> : vector<1x8xf32>
    %158 = vector.multi_reduction <maximumf>, %157, %cst_58 [2] : vector<1x8x16xf32> to vector<1x8xf32>
    %159 = vector.shape_cast %158 : vector<1x8xf32> to vector<1x8x1xf32>
    %160 = vector.broadcast %159 : vector<1x8x1xf32> to vector<1x8x16xf32>
    %161 = arith.subf %157, %160 : vector<1x8x16xf32>
    %162 = math.exp %161 : vector<1x8x16xf32>
    %cst_59 = arith.constant dense<0.000000e+00> : vector<1x8xf32>
    %163 = vector.multi_reduction <add>, %162, %cst_59 [2] : vector<1x8x16xf32> to vector<1x8xf32>
    %164 = vector.shape_cast %163 : vector<1x8xf32> to vector<1x8x1xf32>
    %165 = arith.truncf %162 : vector<1x8x16xf32> to vector<1x8x16xbf16>
    "tpu.trace_start"() <{level = 10 : i32, message = "bqk,bkd->bqd"}> : () -> ()
    %cst_60 = arith.constant dense<0.000000e+00> : vector<1x8x16xf32>
    %166 = tpu.matmul %165, %156, %cst_60 {dimension_numbers = #tpu.dot_dimension_numbers<[2], [1], [1], [2], [0, 0, 0, 1, 1, 2], [0], [0]>} : vector<1x8x16xbf16>, vector<1x16x16xbf16>, vector<1x8x16xf32> -> vector<1x8x16xf32>
    "tpu.trace_stop"() : () -> ()
    %167 = tpu.reciprocal %164 {approx = true} : vector<1x8x1xf32> -> vector<1x8x1xf32>
    %168 = vector.broadcast %167 : vector<1x8x1xf32> to vector<1x8x16xf32>
    %169 = arith.mulf %166, %168 : vector<1x8x16xf32>
    %170 = vector.shape_cast %169 : vector<1x8x16xf32> to vector<8x16xf32>
    %171 = arith.truncf %170 : vector<8x16xf32> to vector<8x16xbf16>
    %c0_61 = arith.constant 0 : index
    %c80 = arith.constant 80 : index
    %172 = vector.load %arg14[%c0_61, %c80] : memref<8x128xbf16, #tpu.memory_space<vmem>>, vector<8x16xbf16>
    tpu.vector_store %arg14[%c0_61, %c80], %171 {strides = array<i32>} : memref<8x128xbf16, #tpu.memory_space<vmem>>, vector<8x16xbf16>,
    %173 = vector.extract_strided_slice %56 {offsets = [0, 0, 96], sizes = [1, 8, 16], strides = [1, 1, 1]} : vector<1x8x128xbf16> to vector<1x8x16xbf16>
    %174 = vector.extract_strided_slice %57 {offsets = [0, 0, 96], sizes = [1, 16, 16], strides = [1, 1, 1]} : vector<1x16x128xbf16> to vector<1x16x16xbf16>
    %175 = vector.extract_strided_slice %58 {offsets = [0, 0, 96], sizes = [1, 16, 16], strides = [1, 1, 1]} : vector<1x16x128xbf16> to vector<1x16x16xbf16>
    "tpu.trace_start"() <{level = 10 : i32, message = "bqd,bkd->bqk"}> : () -> ()
    %cst_62 = arith.constant dense<0.000000e+00> : vector<1x8x16xf32>
    %176 = tpu.matmul %173, %174, %cst_62 {dimension_numbers = #tpu.dot_dimension_numbers<[2], [2], [1], [1], [0, 0, 0, 1, 1, 1], [0], [0]>} : vector<1x8x16xbf16>, vector<1x16x16xbf16>, vector<1x8x16xf32> -> vector<1x8x16xf32>
    "tpu.trace_stop"() : () -> ()
    %cst_63 = arith.constant dense<0xFF800000> : vector<1x8xf32>
    %177 = vector.multi_reduction <maximumf>, %176, %cst_63 [2] : vector<1x8x16xf32> to vector<1x8xf32>
    %178 = vector.shape_cast %177 : vector<1x8xf32> to vector<1x8x1xf32>
    %179 = vector.broadcast %178 : vector<1x8x1xf32> to vector<1x8x16xf32>
    %180 = arith.subf %176, %179 : vector<1x8x16xf32>
    %181 = math.exp %180 : vector<1x8x16xf32>
    %cst_64 = arith.constant dense<0.000000e+00> : vector<1x8xf32>
    %182 = vector.multi_reduction <add>, %181, %cst_64 [2] : vector<1x8x16xf32> to vector<1x8xf32>
    %183 = vector.shape_cast %182 : vector<1x8xf32> to vector<1x8x1xf32>
    %184 = arith.truncf %181 : vector<1x8x16xf32> to vector<1x8x16xbf16>
    "tpu.trace_start"() <{level = 10 : i32, message = "bqk,bkd->bqd"}> : () -> ()
    %cst_65 = arith.constant dense<0.000000e+00> : vector<1x8x16xf32>
    %185 = tpu.matmul %184, %175, %cst_65 {dimension_numbers = #tpu.dot_dimension_numbers<[2], [1], [1], [2], [0, 0, 0, 1, 1, 2], [0], [0]>} : vector<1x8x16xbf16>, vector<1x16x16xbf16>, vector<1x8x16xf32> -> vector<1x8x16xf32>
    "tpu.trace_stop"() : () -> ()
    %186 = tpu.reciprocal %183 {approx = true} : vector<1x8x1xf32> -> vector<1x8x1xf32>
    %187 = vector.broadcast %186 : vector<1x8x1xf32> to vector<1x8x16xf32>
    %188 = arith.mulf %185, %187 : vector<1x8x16xf32>
    %189 = vector.shape_cast %188 : vector<1x8x16xf32> to vector<8x16xf32>
    %190 = arith.truncf %189 : vector<8x16xf32> to vector<8x16xbf16>
    %c0_66 = arith.constant 0 : index
    %c96 = arith.constant 96 : index
    %191 = vector.load %arg14[%c0_66, %c96] : memref<8x128xbf16, #tpu.memory_space<vmem>>, vector<8x16xbf16>
    tpu.vector_store %arg14[%c0_66, %c96], %190 {strides = array<i32>} : memref<8x128xbf16, #tpu.memory_space<vmem>>, vector<8x16xbf16>,
    %192 = vector.extract_strided_slice %56 {offsets = [0, 0, 112], sizes = [1, 8, 16], strides = [1, 1, 1]} : vector<1x8x128xbf16> to vector<1x8x16xbf16>
    %193 = vector.extract_strided_slice %57 {offsets = [0, 0, 112], sizes = [1, 16, 16], strides = [1, 1, 1]} : vector<1x16x128xbf16> to vector<1x16x16xbf16>
    %194 = vector.extract_strided_slice %58 {offsets = [0, 0, 112], sizes = [1, 16, 16], strides = [1, 1, 1]} : vector<1x16x128xbf16> to vector<1x16x16xbf16>
    "tpu.trace_start"() <{level = 10 : i32, message = "bqd,bkd->bqk"}> : () -> ()
    %cst_67 = arith.constant dense<0.000000e+00> : vector<1x8x16xf32>
    %195 = tpu.matmul %192, %193, %cst_67 {dimension_numbers = #tpu.dot_dimension_numbers<[2], [2], [1], [1], [0, 0, 0, 1, 1, 1], [0], [0]>} : vector<1x8x16xbf16>, vector<1x16x16xbf16>, vector<1x8x16xf32> -> vector<1x8x16xf32>
    "tpu.trace_stop"() : () -> ()
    %cst_68 = arith.constant dense<0xFF800000> : vector<1x8xf32>
    %196 = vector.multi_reduction <maximumf>, %195, %cst_68 [2] : vector<1x8x16xf32> to vector<1x8xf32>
    %197 = vector.shape_cast %196 : vector<1x8xf32> to vector<1x8x1xf32>
    %198 = vector.broadcast %197 : vector<1x8x1xf32> to vector<1x8x16xf32>
    %199 = arith.subf %195, %198 : vector<1x8x16xf32>
    %200 = math.exp %199 : vector<1x8x16xf32>
    %cst_69 = arith.constant dense<0.000000e+00> : vector<1x8xf32>
    %201 = vector.multi_reduction <add>, %200, %cst_69 [2] : vector<1x8x16xf32> to vector<1x8xf32>
    %202 = vector.shape_cast %201 : vector<1x8xf32> to vector<1x8x1xf32>
    %203 = arith.truncf %200 : vector<1x8x16xf32> to vector<1x8x16xbf16>
    "tpu.trace_start"() <{level = 10 : i32, message = "bqk,bkd->bqd"}> : () -> ()
    %cst_70 = arith.constant dense<0.000000e+00> : vector<1x8x16xf32>
    %204 = tpu.matmul %203, %194, %cst_70 {dimension_numbers = #tpu.dot_dimension_numbers<[2], [1], [1], [2], [0, 0, 0, 1, 1, 2], [0], [0]>} : vector<1x8x16xbf16>, vector<1x16x16xbf16>, vector<1x8x16xf32> -> vector<1x8x16xf32>
    "tpu.trace_stop"() : () -> ()
    %205 = tpu.reciprocal %202 {approx = true} : vector<1x8x1xf32> -> vector<1x8x1xf32>
    %206 = vector.broadcast %205 : vector<1x8x1xf32> to vector<1x8x16xf32>
    %207 = arith.mulf %204, %206 : vector<1x8x16xf32>
    %208 = vector.shape_cast %207 : vector<1x8x16xf32> to vector<8x16xf32>
    %209 = arith.truncf %208 : vector<8x16xf32> to vector<8x16xbf16>
    %c0_71 = arith.constant 0 : index
    %c112 = arith.constant 112 : index
    %210 = vector.load %arg14[%c0_71, %c112] : memref<8x128xbf16, #tpu.memory_space<vmem>>, vector<8x16xbf16>
    tpu.vector_store %arg14[%c0_71, %c112], %209 {strides = array<i32>} : memref<8x128xbf16, #tpu.memory_space<vmem>>, vector<8x16xbf16>,
    %c0_72 = arith.constant 0 : index
    %c0_73 = arith.constant 0 : index
    %211 = vector.load %arg14[%c0_72, %c0_73] : memref<8x128xbf16, #tpu.memory_space<vmem>>, vector<8x128xbf16>
    %c0_74 = arith.constant 0 : index
    %c0_75 = arith.constant 0 : index
    %212 = vector.load %arg11[%c0_74, %c0_75] : memref<128x128xbf16, #tpu.memory_space<vmem>>, vector<128x128xbf16>
    %cst_76 = arith.constant dense<0.000000e+00> : vector<8x128xf32>
    %213 = tpu.matmul %211, %212, %cst_76 {dimension_numbers = #tpu.dot_dimension_numbers<[1], [0], [0], [1], [0, 0, 1, 1], [], []>} : vector<8x128xbf16>, vector<128x128xbf16>, vector<8x128xf32> -> vector<8x128xf32>
    %c0_77 = arith.constant 0 : index
    %c0_78 = arith.constant 0 : index
    %214 = vector.load %arg12[%c0_77, %c0_78] : memref<1x128xf32, #tpu.memory_space<vmem>>, vector<1x128xf32>
    %215 = vector.broadcast %214 : vector<1x128xf32> to vector<8x128xf32>
    %216 = arith.addf %213, %215 : vector<8x128xf32>
    %217 = vector.shape_cast %216 : vector<8x128xf32> to vector<1x8x128xf32>
    %c0_79 = arith.constant 0 : index
    %c0_80 = arith.constant 0 : index
    %c0_81 = arith.constant 0 : index
    %218 = vector.load %arg13[%c0_79, %c0_80, %c0_81] : memref<1x8x128xf32, #tpu.memory_space<vmem>>, vector<1x8x128xf32>
    tpu.vector_store %arg13[%c0_79, %c0_80, %c0_81], %217 {strides = array<i32>} : memref<1x8x128xf32, #tpu.memory_space<vmem>>, vector<1x8x128xf32>,
    return
  }
  func.func @transform_0(%arg0: i32) -> (i32, i32, i32) {
    %c0_i32 = arith.constant 0 : i32
    %c0_i32_0 = arith.constant 0 : i32
    %c0_i32_1 = arith.constant 0 : i32
    return %arg0, %c0_i32, %c0_i32_0 : i32, i32, i32
  }
  func.func @transform_1(%arg0: i32) -> (i32, i32, i32) {
    %c0_i32 = arith.constant 0 : i32
    %c0_i32_0 = arith.constant 0 : i32
    %c0_i32_1 = arith.constant 0 : i32
    return %arg0, %c0_i32, %c0_i32_0 : i32, i32, i32
  }
  func.func @transform_2(%arg0: i32) -> (i32, i32) {
    %c0_i32 = arith.constant 0 : i32
    %c0_i32_0 = arith.constant 0 : i32
    %c0_i32_1 = arith.constant 0 : i32
    return %c0_i32, %c0_i32_0 : i32, i32
  }
  func.func @transform_3(%arg0: i32) -> (i32, i32) {
    %c0_i32 = arith.constant 0 : i32
    %c0_i32_0 = arith.constant 0 : i32
    %c0_i32_1 = arith.constant 0 : i32
    return %c0_i32, %c0_i32_0 : i32, i32
  }
  func.func @transform_4(%arg0: i32) -> (i32, i32) {
    %c0_i32 = arith.constant 0 : i32
    %c0_i32_0 = arith.constant 0 : i32
    %c0_i32_1 = arith.constant 0 : i32
    return %c0_i32, %c0_i32_0 : i32, i32
  }
  func.func @transform_5(%arg0: i32) -> (i32, i32) {
    %c0_i32 = arith.constant 0 : i32
    %c0_i32_0 = arith.constant 0 : i32
    %c0_i32_1 = arith.constant 0 : i32
    return %c0_i32, %c0_i32_0 : i32, i32
  }
  func.func @transform_6(%arg0: i32) -> (i32, i32) {
    %c0_i32 = arith.constant 0 : i32
    %c0_i32_0 = arith.constant 0 : i32
    %c0_i32_1 = arith.constant 0 : i32
    return %c0_i32, %c0_i32_0 : i32, i32
  }
  func.func @transform_7(%arg0: i32) -> (i32, i32) {
    %c0_i32 = arith.constant 0 : i32
    %c0_i32_0 = arith.constant 0 : i32
    %c0_i32_1 = arith.constant 0 : i32
    return %c0_i32, %c0_i32_0 : i32, i32
  }
  func.func @transform_8(%arg0: i32) -> (i32, i32) {
    %c0_i32 = arith.constant 0 : i32
    %c0_i32_0 = arith.constant 0 : i32
    %c0_i32_1 = arith.constant 0 : i32
    return %c0_i32, %c0_i32_0 : i32, i32
  }
  func.func @transform_9(%arg0: i32) -> (i32, i32) {
    %c0_i32 = arith.constant 0 : i32
    %c0_i32_0 = arith.constant 0 : i32
    %c0_i32_1 = arith.constant 0 : i32
    return %c0_i32, %c0_i32_0 : i32, i32
  }
  func.func @transform_10(%arg0: i32) -> (i32, i32) {
    %c0_i32 = arith.constant 0 : i32
    %c0_i32_0 = arith.constant 0 : i32
    %c0_i32_1 = arith.constant 0 : i32
    return %c0_i32, %c0_i32_0 : i32, i32
  }
  func.func @transform_11(%arg0: i32) -> (i32, i32) {
    %c0_i32 = arith.constant 0 : i32
    %c0_i32_0 = arith.constant 0 : i32
    %c0_i32_1 = arith.constant 0 : i32
    return %c0_i32, %c0_i32_0 : i32, i32
  }
  func.func @transform_12(%arg0: i32) -> (i32, i32, i32) {
    %c0_i32 = arith.constant 0 : i32
    %c0_i32_0 = arith.constant 0 : i32
    %c0_i32_1 = arith.constant 0 : i32
    return %arg0, %c0_i32, %c0_i32_0 : i32, i32, i32
  }
}

</mosaic_0001>

<llo_original>
// kernel: tpu_custom_call.1
$region0: #{tpu_custom_call.1}
  #allocation0 [shape = 'u32[]', space=smem, size = 0x4, offset = 0x4, fixed_abs, tag = 'smem constant byte address 0x4 - core index']
  #allocation1 [shape = 'u32[72,128]{1,0:T(1,128)}', space=vmem, size = 0x9000, scoped, tag = 'internal scratch']
  #allocation2 [shape = 'bf16[8,128]{1,0:T(8,128)(2,1)}', space=vmem, size = 0x800, scoped, tag = 'scratch operand']
  %s0 = inlined_call_operand.vmem [shape: bf16[2,8,128], index: 0, kind: input, shape index: {}]
  %s1 = inlined_call_operand.hbm [shape: bf16[2,16,128], index: 1, kind: input, shape index: {}]
  %s2 = inlined_call_operand.vmem [shape: bf16[128,128], index: 2, kind: input, shape index: {}]
  %s3 = inlined_call_operand.vmem [shape: bf16[128,128], index: 3, kind: input, shape index: {}]
  %s4 = inlined_call_operand.hbm [shape: bf16[128,128], index: 4, kind: input, shape index: {}]
  %s5 = inlined_call_operand.hbm [shape: f32[1,128], index: 5, kind: input, shape index: {}]
  %s6 = inlined_call_operand.hbm [shape: f32[1,128], index: 6, kind: input, shape index: {}]
  %s7 = inlined_call_operand.hbm [shape: f32[1,128], index: 7, kind: input, shape index: {}]
  %s8 = inlined_call_operand.hbm [shape: f32[1,128], index: 8, kind: input, shape index: {}]
  %s9 = inlined_call_operand.vmem [shape: f32[128,8], index: 9, kind: input, shape index: {}]
  %s10 = inlined_call_operand.hbm [shape: bf16[128,128], index: 10, kind: input, shape index: {}]
  %s11 = inlined_call_operand.vmem [shape: f32[1,128], index: 11, kind: input, shape index: {}]
  %s12 = inlined_call_operand.hbm [shape: f32[2,8,128], index: 12, kind: output, shape index: {}]
  %s13 = sld [smem:[#allocation0]]
  $region109: #{tpu_custom_call.1} parent=0
    _
  %s15 = ssub.s32 1, %s13
  %s16 = scalar_select 0, %s15, %s13
  $region1: #{tpu_custom_call.1} parent=0
    #allocation3 [shape = 'u8[8192]{0}', space=vmem, size = 0x2000, scoped, tag = 'input window, operand 1']
    #allocation4 [shape = 's32[2]{0}', space=sflag, size = 0x8, scoped, tag = 'scoped memory for tpu_custom_call.1']
    #allocation5 [shape = 's32[2]{0}', space=sflag, size = 0x8, scoped, tag = 'scoped memory for tpu_custom_call.1']
    #allocation6 [shape = 'u8[32768]{0}', space=vmem, size = 0x8000, scoped, tag = 'input window, operand 4, single buffered']
    #allocation7 [shape = 's32[1]{0}', space=sflag, size = 0x4, scoped, tag = 'scoped memory for tpu_custom_call.1']
    #allocation8 [shape = 'u8[512]{0}', space=vmem, size = 0x400, scoped, tag = 'input window, operand 5, single buffered']
    #allocation9 [shape = 'u8[512]{0}', space=vmem, size = 0x400, scoped, tag = 'input window, operand 6, single buffered']
    #allocation10 [shape = 's32[1]{0}', space=sflag, size = 0x4, scoped, tag = 'scoped memory for tpu_custom_call.1']
    #allocation11 [shape = 'u8[512]{0}', space=vmem, size = 0x400, scoped, tag = 'input window, operand 7, single buffered']
    #allocation12 [shape = 'u8[512]{0}', space=vmem, size = 0x400, scoped, tag = 'input window, operand 8, single buffered']
    #allocation13 [shape = 's32[1]{0}', space=sflag, size = 0x4, scoped, tag = 'scoped memory for tpu_custom_call.1']
    #allocation14 [shape = 'u8[32768]{0}', space=vmem, size = 0x8000, scoped, tag = 'input window, operand 10, single buffered']
    #allocation15 [shape = 'u8[8192]{0}', space=vmem, size = 0x2000, scoped, tag = 'output window, operand 0']
    %17 = vsyncpa [#allocation4], 0
    %s18 = scalar_lea.sflag [#allocation4], 1
    %19 = vsyncpa %s18, 0
    %20 = vsyncpa [#allocation7], 0
    %21 = vsyncpa [#allocation10], 0
    %22 = vsyncpa [#allocation13], 0
    %23 = vsyncpa [#allocation5], 0
    %s24 = scalar_lea.sflag [#allocation5], 1
    %25 = vsyncpa %s24, 0
    loop: start=0, step=1, limit=4
    $region2: #{tpu_custom_call.1} parent=1 // loop_pre_header
      _
    $region3: #{tpu_custom_call.1} parent=1 // loop_header
      %s27 = sphi 0, %s31
      %p28 = scmp.ge.s32.totalorder %s27, 4
      %s37 = sphi 0, %s39
      %s40 = sphi 0, %s37
      %s41 = sphi 0, %s40
      %s57 = sphi 0, %s41
      %s63 = sphi 0, %s65
      %s66 = sphi 0, %s63
      %s67 = sphi 0, %s66
      %s83 = sphi 0, %s67
      %s87 = sphi 0, %s87
      %s89 = sphi 0, %s87
      %s90 = sphi 0, %s89
      %s104 = sphi 0, %s90
      %s108 = sphi 0, %s108
      %s110 = sphi 0, %s108
      %s111 = sphi 0, %s110
      %s125 = sphi 0, %s111
      %s129 = sphi 0, %s129
      %s131 = sphi 0, %s129
      %s132 = sphi 0, %s131
      %s146 = sphi 0, %s132
      %s150 = sphi 0, %s150
      %s152 = sphi 0, %s150
      %s153 = sphi 0, %s152
      %s167 = sphi 0, %s153
      %s171 = sphi 0, %s171
      %s173 = sphi 0, %s171
      %s174 = sphi 0, %s173
      %s188 = sphi 0, %s174
      %s192 = sphi 0, %s192
      %s194 = sphi 0, %s192
      %s195 = sphi 0, %s194
      %s209 = sphi 0, %s195
      %s213 = sphi 0, %s213
      %s215 = sphi 0, %s213
      %s216 = sphi 0, %s215
      %s230 = sphi 0, %s216
      %s234 = sphi 0, %s234
      %s236 = sphi 0, %s234
      %s237 = sphi 0, %s236
      %s251 = sphi 0, %s237
      %s255 = sphi 0, %s255
      %s257 = sphi 0, %s255
      %s258 = sphi 0, %s257
      %s272 = sphi 0, %s258
      %s276 = sphi 0, %s276
      %s278 = sphi 0, %s276
      %s279 = sphi 0, %s278
      %s293 = sphi 0, %s279
      %s299 = sphi 0, %s301
      %s302 = sphi 0, %s299
      %s303 = sphi 0, %s302
      %s319 = sphi 0, %s303
    $region4: #{tpu_custom_call.1} parent=1 // loop_header_branch
      %30 = sbr.rel (%p28) target = $region8
    $region5: #{tpu_custom_call.1} parent=1 // loop_body
      %s32 = ssub.s32 %s27, 1
      %s33 = ssub.s32 %s27, 2
      %s34 = sadd.s32 %s27, 1
      %s35 = ssub.s32 %s27, %s34
      %p36 = scmp.eq.s32.totalorder %s35, 0
      %s38 = sadd.s32 %s37, 1
      %s39 = scalar_select %p36, %s37, %s38
      %p42 = pneg %p36
      %p43 = scmp.eq.s32.totalorder %s27, 1
      %p44 = por %p42, %p43
      %p45 = scmp.ne.s32.totalorder %s37, %s40
      %p46 = scmp.eq.s32.totalorder %s27, 0
      %p47 = por %p45, %p46
      %p48 = scmp.ne.s32.totalorder %s37, %s40
      %p49 = scmp.eq.s32.totalorder %s32, 1
      %p50 = por %p48, %p49
      %p51 = scmp.ne.s32.totalorder %s40, %s41
      %p52 = scmp.eq.s32.totalorder %s32, 0
      %p53 = por %p51, %p52
      %p54 = scmp.ne.s32.totalorder %s40, %s41
      %p55 = scmp.eq.s32.totalorder %s33, 1
      %p56 = por %p54, %p55
      %p58 = scmp.ne.s32.totalorder %s41, %s57
      %p59 = scmp.eq.s32.totalorder %s33, 0
      %p60 = por %p58, %p59
      %s61 = ssub.s32 %s27, %s34
      %p62 = scmp.eq.s32.totalorder %s61, 0
      %s64 = sadd.s32 %s63, 1
      %s65 = scalar_select %p62, %s63, %s64
      %p68 = pneg %p62
      %p69 = scmp.eq.s32.totalorder %s27, 1
      %p70 = por %p68, %p69
      %p71 = scmp.ne.s32.totalorder %s63, %s66
      %p72 = scmp.eq.s32.totalorder %s27, 0
      %p73 = por %p71, %p72
      %p74 = scmp.ne.s32.totalorder %s63, %s66
      %p75 = scmp.eq.s32.totalorder %s32, 1
      %p76 = por %p74, %p75
      %p77 = scmp.ne.s32.totalorder %s66, %s67
      %p78 = scmp.eq.s32.totalorder %s32, 0
      %p79 = por %p77, %p78
      %p80 = scmp.ne.s32.totalorder %s66, %s67
      %p81 = scmp.eq.s32.totalorder %s33, 1
      %p82 = por %p80, %p81
      %p84 = scmp.ne.s32.totalorder %s67, %s83
      %p85 = scmp.eq.s32.totalorder %s33, 0
      %p86 = por %p84, %p85
      %s88 = sadd.s32 %s87, 1
      %p91 = scmp.eq.s32.totalorder %s27, 1
      %p92 = scmp.ne.s32.totalorder %s87, %s89
      %p93 = scmp.eq.s32.totalorder %s27, 0
      %p94 = por %p92, %p93
      %p95 = scmp.ne.s32.totalorder %s87, %s89
      %p96 = scmp.eq.s32.totalorder %s32, 1
      %p97 = por %p95, %p96
      %p98 = scmp.ne.s32.totalorder %s89, %s90
      %p99 = scmp.eq.s32.totalorder %s32, 0
      %p100 = por %p98, %p99
      %p101 = scmp.ne.s32.totalorder %s89, %s90
      %p102 = scmp.eq.s32.totalorder %s33, 1
      %p103 = por %p101, %p102
      %p105 = scmp.ne.s32.totalorder %s90, %s104
      %p106 = scmp.eq.s32.totalorder %s33, 0
      %p107 = por %p105, %p106
      %s109 = sadd.s32 %s108, 1
      %p112 = scmp.eq.s32.totalorder %s27, 1
      %p113 = scmp.ne.s32.totalorder %s108, %s110
      %p114 = scmp.eq.s32.totalorder %s27, 0
      %p115 = por %p113, %p114
      %p116 = scmp.ne.s32.totalorder %s108, %s110
      %p117 = scmp.eq.s32.totalorder %s32, 1
      %p118 = por %p116, %p117
      %p119 = scmp.ne.s32.totalorder %s110, %s111
      %p120 = scmp.eq.s32.totalorder %s32, 0
      %p121 = por %p119, %p120
      %p122 = scmp.ne.s32.totalorder %s110, %s111
      %p123 = scmp.eq.s32.totalorder %s33, 1
      %p124 = por %p122, %p123
      %p126 = scmp.ne.s32.totalorder %s111, %s125
      %p127 = scmp.eq.s32.totalorder %s33, 0
      %p128 = por %p126, %p127
      %s130 = sadd.s32 %s129, 1
      %p133 = scmp.eq.s32.totalorder %s27, 1
      %p134 = scmp.ne.s32.totalorder %s129, %s131
      %p135 = scmp.eq.s32.totalorder %s27, 0
      %p136 = por %p134, %p135
      %p137 = scmp.ne.s32.totalorder %s129, %s131
      %p138 = scmp.eq.s32.totalorder %s32, 1
      %p139 = por %p137, %p138
      %p140 = scmp.ne.s32.totalorder %s131, %s132
      %p141 = scmp.eq.s32.totalorder %s32, 0
      %p142 = por %p140, %p141
      %p143 = scmp.ne.s32.totalorder %s131, %s132
      %p144 = scmp.eq.s32.totalorder %s33, 1
      %p145 = por %p143, %p144
      %p147 = scmp.ne.s32.totalorder %s132, %s146
      %p148 = scmp.eq.s32.totalorder %s33, 0
      %p149 = por %p147, %p148
      %s151 = sadd.s32 %s150, 1
      %p154 = scmp.eq.s32.totalorder %s27, 1
      %p155 = scmp.ne.s32.totalorder %s150, %s152
      %p156 = scmp.eq.s32.totalorder %s27, 0
      %p157 = por %p155, %p156
      %p158 = scmp.ne.s32.totalorder %s150, %s152
      %p159 = scmp.eq.s32.totalorder %s32, 1
      %p160 = por %p158, %p159
      %p161 = scmp.ne.s32.totalorder %s152, %s153
      %p162 = scmp.eq.s32.totalorder %s32, 0
      %p163 = por %p161, %p162
      %p164 = scmp.ne.s32.totalorder %s152, %s153
      %p165 = scmp.eq.s32.totalorder %s33, 1
      %p166 = por %p164, %p165
      %p168 = scmp.ne.s32.totalorder %s153, %s167
      %p169 = scmp.eq.s32.totalorder %s33, 0
      %p170 = por %p168, %p169
      %s172 = sadd.s32 %s171, 1
      %p175 = scmp.eq.s32.totalorder %s27, 1
      %p176 = scmp.ne.s32.totalorder %s171, %s173
      %p177 = scmp.eq.s32.totalorder %s27, 0
      %p178 = por %p176, %p177
      %p179 = scmp.ne.s32.totalorder %s171, %s173
      %p180 = scmp.eq.s32.totalorder %s32, 1
      %p181 = por %p179, %p180
      %p182 = scmp.ne.s32.totalorder %s173, %s174
      %p183 = scmp.eq.s32.totalorder %s32, 0
      %p184 = por %p182, %p183
      %p185 = scmp.ne.s32.totalorder %s173, %s174
      %p186 = scmp.eq.s32.totalorder %s33, 1
      %p187 = por %p185, %p186
      %p189 = scmp.ne.s32.totalorder %s174, %s188
      %p190 = scmp.eq.s32.totalorder %s33, 0
      %p191 = por %p189, %p190
      %s193 = sadd.s32 %s192, 1
      %p196 = scmp.eq.s32.totalorder %s27, 1
      %p197 = scmp.ne.s32.totalorder %s192, %s194
      %p198 = scmp.eq.s32.totalorder %s27, 0
      %p199 = por %p197, %p198
      %p200 = scmp.ne.s32.totalorder %s192, %s194
      %p201 = scmp.eq.s32.totalorder %s32, 1
      %p202 = por %p200, %p201
      %p203 = scmp.ne.s32.totalorder %s194, %s195
      %p204 = scmp.eq.s32.totalorder %s32, 0
      %p205 = por %p203, %p204
      %p206 = scmp.ne.s32.totalorder %s194, %s195
      %p207 = scmp.eq.s32.totalorder %s33, 1
      %p208 = por %p206, %p207
      %p210 = scmp.ne.s32.totalorder %s195, %s209
      %p211 = scmp.eq.s32.totalorder %s33, 0
      %p212 = por %p210, %p211
      %s214 = sadd.s32 %s213, 1
      %p217 = scmp.eq.s32.totalorder %s27, 1
      %p218 = scmp.ne.s32.totalorder %s213, %s215
      %p219 = scmp.eq.s32.totalorder %s27, 0
      %p220 = por %p218, %p219
      %p221 = scmp.ne.s32.totalorder %s213, %s215
      %p222 = scmp.eq.s32.totalorder %s32, 1
      %p223 = por %p221, %p222
      %p224 = scmp.ne.s32.totalorder %s215, %s216
      %p225 = scmp.eq.s32.totalorder %s32, 0
      %p226 = por %p224, %p225
      %p227 = scmp.ne.s32.totalorder %s215, %s216
      %p228 = scmp.eq.s32.totalorder %s33, 1
      %p229 = por %p227, %p228
      %p231 = scmp.ne.s32.totalorder %s216, %s230
      %p232 = scmp.eq.s32.totalorder %s33, 0
      %p233 = por %p231, %p232
      %s235 = sadd.s32 %s234, 1
      %p238 = scmp.eq.s32.totalorder %s27, 1
      %p239 = scmp.ne.s32.totalorder %s234, %s236
      %p240 = scmp.eq.s32.totalorder %s27, 0
      %p241 = por %p239, %p240
      %p242 = scmp.ne.s32.totalorder %s234, %s236
      %p243 = scmp.eq.s32.totalorder %s32, 1
      %p244 = por %p242, %p243
      %p245 = scmp.ne.s32.totalorder %s236, %s237
      %p246 = scmp.eq.s32.totalorder %s32, 0
      %p247 = por %p245, %p246
      %p248 = scmp.ne.s32.totalorder %s236, %s237
      %p249 = scmp.eq.s32.totalorder %s33, 1
      %p250 = por %p248, %p249
      %p252 = scmp.ne.s32.totalorder %s237, %s251
      %p253 = scmp.eq.s32.totalorder %s33, 0
      %p254 = por %p252, %p253
      %s256 = sadd.s32 %s255, 1
      %p259 = scmp.eq.s32.totalorder %s27, 1
      %p260 = scmp.ne.s32.totalorder %s255, %s257
      %p261 = scmp.eq.s32.totalorder %s27, 0
      %p262 = por %p260, %p261
      %p263 = scmp.ne.s32.totalorder %s255, %s257
      %p264 = scmp.eq.s32.totalorder %s32, 1
      %p265 = por %p263, %p264
      %p266 = scmp.ne.s32.totalorder %s257, %s258
      %p267 = scmp.eq.s32.totalorder %s32, 0
      %p268 = por %p266, %p267
      %p269 = scmp.ne.s32.totalorder %s257, %s258
      %p270 = scmp.eq.s32.totalorder %s33, 1
      %p271 = por %p269, %p270
      %p273 = scmp.ne.s32.totalorder %s258, %s272
      %p274 = scmp.eq.s32.totalorder %s33, 0
      %p275 = por %p273, %p274
      %s277 = sadd.s32 %s276, 1
      %p280 = scmp.eq.s32.totalorder %s27, 1
      %p281 = scmp.ne.s32.totalorder %s276, %s278
      %p282 = scmp.eq.s32.totalorder %s27, 0
      %p283 = por %p281, %p282
      %p284 = scmp.ne.s32.totalorder %s276, %s278
      %p285 = scmp.eq.s32.totalorder %s32, 1
      %p286 = por %p284, %p285
      %p287 = scmp.ne.s32.totalorder %s278, %s279
      %p288 = scmp.eq.s32.totalorder %s32, 0
      %p289 = por %p287, %p288
      %p290 = scmp.ne.s32.totalorder %s278, %s279
      %p291 = scmp.eq.s32.totalorder %s33, 1
      %p292 = por %p290, %p291
      %p294 = scmp.ne.s32.totalorder %s279, %s293
      %p295 = scmp.eq.s32.totalorder %s33, 0
      %p296 = por %p294, %p295
      %s297 = ssub.s32 %s27, %s34
      %p298 = scmp.eq.s32.totalorder %s297, 0
      %s300 = sadd.s32 %s299, 1
      %s301 = scalar_select %p298, %s299, %s300
      %p304 = pneg %p298
      %p305 = scmp.eq.s32.totalorder %s27, 1
      %p306 = por %p304, %p305
      %p307 = scmp.ne.s32.totalorder %s299, %s302
      %p308 = scmp.eq.s32.totalorder %s27, 0
      %p309 = por %p307, %p308
      %p310 = scmp.ne.s32.totalorder %s299, %s302
      %p311 = scmp.eq.s32.totalorder %s32, 1
      %p312 = por %p310, %p311
      %p313 = scmp.ne.s32.totalorder %s302, %s303
      %p314 = scmp.eq.s32.totalorder %s32, 0
      %p315 = por %p313, %p314
      %p316 = scmp.ne.s32.totalorder %s302, %s303
      %p317 = scmp.eq.s32.totalorder %s33, 1
      %p318 = por %p316, %p317
      %p320 = scmp.ne.s32.totalorder %s303, %s319
      %p321 = scmp.eq.s32.totalorder %s33, 0
      %p322 = por %p320, %p321
      %p323 = scmp.le.s32.totalorder 1, %s27
      %p324 = scmp.lt.s32.totalorder %s27, 3
      %p325 = pnand %p323, %p324
      %p326 = pneg %p325
      // Predicated region
      $region9: #{tpu_custom_call.1} parent=5 // pred_check
        _
      $region10: #{tpu_custom_call.1} parent=5 // pred_check_branch
        %328 = sbr.rel (%p325) target = $region12
      $region11: #{tpu_custom_call.1} parent=5 // pred_region
        %s329 = ssub.s32 %s27, 1
        // Predicated region
        $region13: #{tpu_custom_call.1} parent=11 // pred_check
          %p330 = pneg %p100
        $region14: #{tpu_custom_call.1} parent=11 // pred_check_branch
          %332 = sbr.rel (%p330) target = $region16
        $region15: #{tpu_custom_call.1} parent=11 // pred_region
          _
        $region16: #{tpu_custom_call.1} parent=11 // pred_fallthru
          _
        // Predicated region
        $region17: #{tpu_custom_call.1} parent=11 // pred_check
          %p333 = pneg %p121
        $region18: #{tpu_custom_call.1} parent=11 // pred_check_branch
          %335 = sbr.rel (%p333) target = $region20
        $region19: #{tpu_custom_call.1} parent=11 // pred_region
          _
        $region20: #{tpu_custom_call.1} parent=11 // pred_fallthru
          _
        // Predicated region
        $region21: #{tpu_custom_call.1} parent=11 // pred_check
          %p336 = pneg %p142
        $region22: #{tpu_custom_call.1} parent=11 // pred_check_branch
          %338 = sbr.rel (%p336) target = $region24
        $region23: #{tpu_custom_call.1} parent=11 // pred_region
          %340 = vsyncadd [#allocation7], 0
          %s341 = sshll.u32 %s4, 4
          %s342 = int_to_ptr.hbm [resolvable:$true] %s341
          %s343 = sshll.u32 [#allocation6], 4
          %s344 = int_to_ptr.vmem [resolvable:$true] %s343
          %349 = dma.hbm_to_vmem [thread:$0]  %s342, 1024, %s344, [#allocation7], 64, 64, 4
        $region24: #{tpu_custom_call.1} parent=11 // pred_fallthru
          _
        // Predicated region
        $region25: #{tpu_custom_call.1} parent=11 // pred_check
          %p350 = pneg %p163
        $region26: #{tpu_custom_call.1} parent=11 // pred_check_branch
          %352 = sbr.rel (%p350) target = $region28
        $region27: #{tpu_custom_call.1} parent=11 // pred_region
          %354 = vsyncadd [#allocation7], 0
          %s356 = sshll.u32 %s5, 4
          %s357 = int_to_ptr.hbm [resolvable:$true] %s356
          %s358 = sshll.u32 [#allocation8], 4
          %s359 = int_to_ptr.vmem [resolvable:$true] %s358
          %361 = dma.hbm_to_vmem [thread:$0]  %s357, 16, %s359, [#allocation7]
        $region28: #{tpu_custom_call.1} parent=11 // pred_fallthru
          _
        // Predicated region
        $region29: #{tpu_custom_call.1} parent=11 // pred_check
          %p362 = pneg %p184
        $region30: #{tpu_custom_call.1} parent=11 // pred_check_branch
          %364 = sbr.rel (%p362) target = $region32
        $region31: #{tpu_custom_call.1} parent=11 // pred_region
          %366 = vsyncadd [#allocation10], 0
          %s368 = sshll.u32 %s6, 4
          %s369 = int_to_ptr.hbm [resolvable:$true] %s368
          %s370 = sshll.u32 [#allocation9], 4
          %s371 = int_to_ptr.vmem [resolvable:$true] %s370
          %373 = dma.hbm_to_vmem [thread:$0]  %s369, 16, %s371, [#allocation10]
        $region32: #{tpu_custom_call.1} parent=11 // pred_fallthru
          _
        // Predicated region
        $region33: #{tpu_custom_call.1} parent=11 // pred_check
          %p374 = pneg %p205
        $region34: #{tpu_custom_call.1} parent=11 // pred_check_branch
          %376 = sbr.rel (%p374) target = $region36
        $region35: #{tpu_custom_call.1} parent=11 // pred_region
          %378 = vsyncadd [#allocation10], 0
          %s380 = sshll.u32 %s7, 4
          %s381 = int_to_ptr.hbm [resolvable:$true] %s380
          %s382 = sshll.u32 [#allocation11], 4
          %s383 = int_to_ptr.vmem [resolvable:$true] %s382
          %385 = dma.hbm_to_vmem [thread:$0]  %s381, 16, %s383, [#allocation10]
        $region36: #{tpu_custom_call.1} parent=11 // pred_fallthru
          _
        // Predicated region
        $region37: #{tpu_custom_call.1} parent=11 // pred_check
          %p386 = pneg %p226
        $region38: #{tpu_custom_call.1} parent=11 // pred_check_branch
          %388 = sbr.rel (%p386) target = $region40
        $region39: #{tpu_custom_call.1} parent=11 // pred_region
          %390 = vsyncadd [#allocation13], 0
          %s392 = sshll.u32 %s8, 4
          %s393 = int_to_ptr.hbm [resolvable:$true] %s392
          %s394 = sshll.u32 [#allocation12], 4
          %s395 = int_to_ptr.vmem [resolvable:$true] %s394
          %397 = dma.hbm_to_vmem [thread:$0]  %s393, 16, %s395, [#allocation13]
        $region40: #{tpu_custom_call.1} parent=11 // pred_fallthru
          _
        // Predicated region
        $region41: #{tpu_custom_call.1} parent=11 // pred_check
          %p398 = pneg %p247
        $region42: #{tpu_custom_call.1} parent=11 // pred_check_branch
          %400 = sbr.rel (%p398) target = $region44
        $region43: #{tpu_custom_call.1} parent=11 // pred_region
          _
        $region44: #{tpu_custom_call.1} parent=11 // pred_fallthru
          _
        // Predicated region
        $region45: #{tpu_custom_call.1} parent=11 // pred_check
          %p401 = pneg %p268
        $region46: #{tpu_custom_call.1} parent=11 // pred_check_branch
          %403 = sbr.rel (%p401) target = $region48
        $region47: #{tpu_custom_call.1} parent=11 // pred_region
          %405 = vsyncadd [#allocation13], 0
          %s406 = sshll.u32 %s10, 4
          %s407 = int_to_ptr.hbm [resolvable:$true] %s406
          %s408 = sshll.u32 [#allocation14], 4
          %s409 = int_to_ptr.vmem [resolvable:$true] %s408
          %414 = dma.hbm_to_vmem [thread:$0]  %s407, 1024, %s409, [#allocation13], 64, 64, 4
        $region48: #{tpu_custom_call.1} parent=11 // pred_fallthru
          _
        // Predicated region
        $region49: #{tpu_custom_call.1} parent=11 // pred_check
          %p415 = pneg %p289
        $region50: #{tpu_custom_call.1} parent=11 // pred_check_branch
          %417 = sbr.rel (%p415) target = $region52
        $region51: #{tpu_custom_call.1} parent=11 // pred_region
          _
        $region52: #{tpu_custom_call.1} parent=11 // pred_fallthru
          _
      $region12: #{tpu_custom_call.1} parent=5 // pred_fallthru
        _
      %p418 = scmp.lt.s32.totalorder %s27, 2
      // Predicated region
      $region53: #{tpu_custom_call.1} parent=5 // pred_check
        %p419 = pneg %p418
      $region54: #{tpu_custom_call.1} parent=5 // pred_check_branch
        %421 = sbr.rel (%p419) target = $region56
      $region55: #{tpu_custom_call.1} parent=5 // pred_region
        // Predicated region
        $region57: #{tpu_custom_call.1} parent=55 // pred_check
          %p422 = pneg %p47
        $region58: #{tpu_custom_call.1} parent=55 // pred_check_branch
          %424 = sbr.rel (%p422) target = $region60
        $region59: #{tpu_custom_call.1} parent=55 // pred_region
          %p425 = scmp.lt.s32.totalorder %s27, 1
          %s426 = scalar_select %p425, %s27, 1
          %s427 = smul.addr %s426, 4
          %s428 = scalar_lea.vmem %s0, %s427
        $region60: #{tpu_custom_call.1} parent=55 // pred_fallthru
          _
        // Predicated region
        $region61: #{tpu_custom_call.1} parent=55 // pred_check
          %p429 = pneg %p73
        $region62: #{tpu_custom_call.1} parent=55 // pred_check_branch
          %431 = sbr.rel (%p429) target = $region64
        $region63: #{tpu_custom_call.1} parent=55 // pred_region
          %s432 = sand.u32 %s63, 1
          %s433 = scalar_lea.sflag [#allocation4], %s432
          %s434 = sand.u32 %s63, 1
          %s435 = smul.addr %s434, 8
          %s436 = scalar_lea.vmem [#allocation3], %s435
          %438 = vsyncadd %s433, 0
          %s439 = smul.addr %s27, 2
          %s440 = smul.addr %s439, 4
          %s441 = scalar_lea.hbm %s1, %s440
          %s442 = sshll.u32 %s441, 4
          %s443 = int_to_ptr.hbm [resolvable:$true] %s442
          %s444 = sshll.u32 %s436, 4
          %s445 = int_to_ptr.vmem [resolvable:$true] %s444
          %450 = dma.hbm_to_vmem [thread:$0]  %s443, 128, %s445, %s433, 64, 64, 4
        $region64: #{tpu_custom_call.1} parent=55 // pred_fallthru
          _
      $region56: #{tpu_custom_call.1} parent=5 // pred_fallthru
        _
      %p451 = scmp.le.s32.totalorder 1, %s27
      %p452 = scmp.lt.s32.totalorder %s27, 3
      %p453 = pnand %p451, %p452
      %p454 = pneg %p453
      // Predicated region
      $region65: #{tpu_custom_call.1} parent=5 // pred_check
        _
      $region66: #{tpu_custom_call.1} parent=5 // pred_check_branch
        %456 = sbr.rel (%p453) target = $region68
      $region67: #{tpu_custom_call.1} parent=5 // pred_region
        %s457 = ssub.s32 %s27, 1
        %s458 = sand.u32 %s66, 1
        %s459 = scalar_lea.sflag [#allocation4], %s458
        %s460 = sand.u32 %s66, 1
        %s461 = smul.addr %s460, 8
        %s462 = scalar_lea.vmem [#allocation3], %s461
        // Predicated region
        $region69: #{tpu_custom_call.1} parent=67 // pred_check
          %p463 = pneg %p79
        $region70: #{tpu_custom_call.1} parent=67 // pred_check_branch
          %465 = sbr.rel (%p463) target = $region72
        $region71: #{tpu_custom_call.1} parent=67 // pred_region
          %467 = dma.done %s459, 128
        $region72: #{tpu_custom_call.1} parent=67 // pred_fallthru
          _
        // Predicated region
        $region73: #{tpu_custom_call.1} parent=67 // pred_check
          %p468 = pneg %p142
        $region74: #{tpu_custom_call.1} parent=67 // pred_check_branch
          %470 = sbr.rel (%p468) target = $region76
        $region75: #{tpu_custom_call.1} parent=67 // pred_region
          %472 = dma.done [#allocation7], 1024
        $region76: #{tpu_custom_call.1} parent=67 // pred_fallthru
          _
        // Predicated region
        $region77: #{tpu_custom_call.1} parent=67 // pred_check
          %p473 = pneg %p163
        $region78: #{tpu_custom_call.1} parent=67 // pred_check_branch
          %475 = sbr.rel (%p473) target = $region80
        $region79: #{tpu_custom_call.1} parent=67 // pred_region
          %477 = dma.done [#allocation7], 16
        $region80: #{tpu_custom_call.1} parent=67 // pred_fallthru
          _
        // Predicated region
        $region81: #{tpu_custom_call.1} parent=67 // pred_check
          %p478 = pneg %p184
        $region82: #{tpu_custom_call.1} parent=67 // pred_check_branch
          %480 = sbr.rel (%p478) target = $region84
        $region83: #{tpu_custom_call.1} parent=67 // pred_region
          %482 = dma.done [#allocation10], 16
        $region84: #{tpu_custom_call.1} parent=67 // pred_fallthru
          _
        // Predicated region
        $region85: #{tpu_custom_call.1} parent=67 // pred_check
          %p483 = pneg %p205
        $region86: #{tpu_custom_call.1} parent=67 // pred_check_branch
          %485 = sbr.rel (%p483) target = $region88
        $region87: #{tpu_custom_call.1} parent=67 // pred_region
          %487 = dma.done [#allocation10], 16
        $region88: #{tpu_custom_call.1} parent=67 // pred_fallthru
          _
        // Predicated region
        $region89: #{tpu_custom_call.1} parent=67 // pred_check
          %p488 = pneg %p226
        $region90: #{tpu_custom_call.1} parent=67 // pred_check_branch
          %490 = sbr.rel (%p488) target = $region92
        $region91: #{tpu_custom_call.1} parent=67 // pred_region
          %492 = dma.done [#allocation13], 16
        $region92: #{tpu_custom_call.1} parent=67 // pred_fallthru
          _
        // Predicated region
        $region93: #{tpu_custom_call.1} parent=67 // pred_check
          %p493 = pneg %p268
        $region94: #{tpu_custom_call.1} parent=67 // pred_check_branch
          %495 = sbr.rel (%p493) target = $region96
        $region95: #{tpu_custom_call.1} parent=67 // pred_region
          %497 = dma.done [#allocation13], 1024
        $region96: #{tpu_custom_call.1} parent=67 // pred_fallthru
          _
        %p498 = scmp.lt.s32.totalorder %s32, 1
        %s499 = scalar_select %p498, %s32, 1
        %s500 = smul.addr %s499, 4
        %s501 = scalar_lea.vmem %s0, %s500
        %p502 = pneg %p53
        %p503 = pneg %p50
        %s504 = sand.u32 %s66, 1
        %s505 = scalar_lea.sflag [#allocation4], %s504
        %s506 = sand.u32 %s66, 1
        %s507 = smul.addr %s506, 8
        %s508 = scalar_lea.vmem [#allocation3], %s507
        %p509 = pneg %p79
        %p510 = pneg %p76
        %p511 = pneg %p100
        %p512 = pneg %p97
        %p513 = pneg %p121
        %p514 = pneg %p118
        %p515 = pneg %p142
        %p516 = pneg %p139
        %p517 = pneg %p163
        %p518 = pneg %p160
        %p519 = pneg %p184
        %p520 = pneg %p181
        %p521 = pneg %p205
        %p522 = pneg %p202
        %p523 = pneg %p226
        %p524 = pneg %p223
        %p525 = pneg %p247
        %p526 = pneg %p244
        %p527 = pneg %p268
        %p528 = pneg %p265
        %p529 = pneg %p289
        %p530 = pneg %p286
        %p531 = pneg %p315
        %p532 = pneg %p312
        %s533 = sand.u32 %s302, 1
        %s534 = scalar_lea.sflag [#allocation5], %s533
        %s535 = sand.u32 %s302, 1
        %s536 = smul.addr %s535, 8
        %s537 = scalar_lea.vmem [#allocation15], %s536
        %p538 = scmp.lt.s32.totalorder %s32, 1
        %s539 = scalar_select %p538, %s32, 1
        %s540 = smul.addr %s539, 4
        %s541 = scalar_lea.vmem %s0, %s540
        %v543 = vld [vmem:[%s541] sm:$0xf]
        %v544 = vld [vmem:[%s462] sm:$0xf]
        %v545 = vld [vmem:[%s462 + $0x4] sm:$0xf]
        %v546 = vld [vmem:[%s2] sm:$0xf]
        %v547 = vld [vmem:[%s2 + $0x4] sm:$0xf]
        %v548 = vld [vmem:[%s2 + $0x8] sm:$0xf]
        %v549 = vld [vmem:[%s2 + $0xc] sm:$0xf]
        %v550 = vld [vmem:[%s2 + $0x10] sm:$0xf]
        %v551 = vld [vmem:[%s2 + $0x14] sm:$0xf]
        %v552 = vld [vmem:[%s2 + $0x18] sm:$0xf]
        %v553 = vld [vmem:[%s2 + $0x1c] sm:$0xf]
        %v554 = vld [vmem:[%s2 + $0x20] sm:$0xf]
        %v555 = vld [vmem:[%s2 + $0x24] sm:$0xf]
        %v556 = vld [vmem:[%s2 + $0x28] sm:$0xf]
        %v557 = vld [vmem:[%s2 + $0x2c] sm:$0xf]
        %v558 = vld [vmem:[%s2 + $0x30] sm:$0xf]
        %v559 = vld [vmem:[%s2 + $0x34] sm:$0xf]
        %v560 = vld [vmem:[%s2 + $0x38] sm:$0xf]
        %v561 = vld [vmem:[%s2 + $0x3c] sm:$0xf]
        %v578 = vunpack.c.l.b16 %v546
        %v579 = vunpack.c.l.b16 %v547
        %v580 = vunpack.c.l.b16 %v548
        %v581 = vunpack.c.l.b16 %v549
        %v582 = vunpack.c.l.b16 %v550
        %v583 = vunpack.c.l.b16 %v551
        %v584 = vunpack.c.l.b16 %v552
        %v585 = vunpack.c.l.b16 %v553
        %v586 = vunpack.c.l.b16 %v554
        %v587 = vunpack.c.l.b16 %v555
        %v588 = vunpack.c.l.b16 %v556
        %v589 = vunpack.c.l.b16 %v557
        %v590 = vunpack.c.l.b16 %v558
        %v591 = vunpack.c.l.b16 %v559
        %v592 = vunpack.c.l.b16 %v560
        %v593 = vunpack.c.l.b16 %v561
        %v594 = vpack.c.b16 %v579, %v578
        %v595 = vpack.c.b16 %v581, %v580
        %v596 = vpack.c.b16 %v583, %v582
        %v597 = vpack.c.b16 %v585, %v584
        %v598 = vpack.c.b16 %v587, %v586
        %v599 = vpack.c.b16 %v589, %v588
        %v600 = vpack.c.b16 %v591, %v590
        %v601 = vpack.c.b16 %v593, %v592
        %610 = vmatpush.bf16.msra.mxu0 %v601
        %611 = vmatpush.bf16.msra.mxu0 %v600
        %612 = vmatpush.bf16.msra.mxu0 %v599
        %613 = vmatpush.bf16.msra.mxu0 %v598
        %614 = vmatpush.bf16.msra.mxu0 %v597
        %615 = vmatpush.bf16.msra.mxu0 %v596
        %616 = vmatpush.bf16.msra.mxu0 %v595
        %617 = vmatpush.bf16.msra.mxu0 %v594
        %618 = vmatmul.bf16.gmra.mxu0 %v543
        %v619 = vpop.f32.mrf.mxu0
        %v620 = vadd.f32 0.0, %v619
        %v621 = vpop.f32.mrf.mxu0
        %622 = vdwg.mxu0
        %v623 = vld [vmem:[%s3] sm:$0xf]
        %v624 = vld [vmem:[%s3 + $0x4] sm:$0xf]
        %v625 = vld [vmem:[%s3 + $0x8] sm:$0xf]
        %v626 = vld [vmem:[%s3 + $0xc] sm:$0xf]
        %v627 = vld [vmem:[%s3 + $0x10] sm:$0xf]
        %v628 = vld [vmem:[%s3 + $0x14] sm:$0xf]
        %v629 = vld [vmem:[%s3 + $0x18] sm:$0xf]
        %v630 = vld [vmem:[%s3 + $0x1c] sm:$0xf]
        %v631 = vld [vmem:[%s3 + $0x20] sm:$0xf]
        %v632 = vld [vmem:[%s3 + $0x24] sm:$0xf]
        %v633 = vld [vmem:[%s3 + $0x28] sm:$0xf]
        %v634 = vld [vmem:[%s3 + $0x2c] sm:$0xf]
        %v635 = vld [vmem:[%s3 + $0x30] sm:$0xf]
        %v636 = vld [vmem:[%s3 + $0x34] sm:$0xf]
        %v637 = vld [vmem:[%s3 + $0x38] sm:$0xf]
        %v638 = vld [vmem:[%s3 + $0x3c] sm:$0xf]
        %v641 = vunpack.c.l.b16 %v544
        %v642 = vunpack.c.l.b16 %v545
        %v643 = vpack.c.b16 %v642, %v641
        %v661 = vunpack.c.l.b16 %v623
        %v662 = vunpack.c.l.b16 %v624
        %v663 = vunpack.c.l.b16 %v625
        %v664 = vunpack.c.l.b16 %v626
        %v665 = vunpack.c.l.b16 %v627
        %v666 = vunpack.c.l.b16 %v628
        %v667 = vunpack.c.l.b16 %v629
        %v668 = vunpack.c.l.b16 %v630
        %v669 = vunpack.c.l.b16 %v631
        %v670 = vunpack.c.l.b16 %v632
        %v671 = vunpack.c.l.b16 %v633
        %v672 = vunpack.c.l.b16 %v634
        %v673 = vunpack.c.l.b16 %v635
        %v674 = vunpack.c.l.b16 %v636
        %v675 = vunpack.c.l.b16 %v637
        %v676 = vunpack.c.l.b16 %v638
        %v677 = vpack.c.b16 %v662, %v661
        %v678 = vpack.c.b16 %v664, %v663
        %v679 = vpack.c.b16 %v666, %v665
        %v680 = vpack.c.b16 %v668, %v667
        %v681 = vpack.c.b16 %v670, %v669
        %v682 = vpack.c.b16 %v672, %v671
        %v683 = vpack.c.b16 %v674, %v673
        %v684 = vpack.c.b16 %v676, %v675
        %693 = vmatpush.bf16.msra.mxu0 %v684
        %694 = vmatpush.bf16.msra.mxu0 %v683
        %695 = vmatpush.bf16.msra.mxu0 %v682
        %696 = vmatpush.bf16.msra.mxu0 %v681
        %697 = vmatpush.bf16.msra.mxu0 %v680
        %698 = vmatpush.bf16.msra.mxu0 %v679
        %699 = vmatpush.bf16.msra.mxu0 %v678
        %700 = vmatpush.bf16.msra.mxu0 %v677
        %701 = vmatmul.bf16.gmra.mxu0 %v643
        %v702 = vpop.f32.mrf.mxu0
        %v703 = vadd.f32 0.0, %v702
        %v704 = vpop.f32.mrf.mxu0
        %v705 = vadd.f32 0.0, %v704
        %706 = vdwg.mxu0
        %v707 = vld [vmem:[#allocation6] sm:$0xf]
        %v708 = vld [vmem:[#allocation6 + $0x4] sm:$0xf]
        %v709 = vld [vmem:[#allocation6 + $0x8] sm:$0xf]
        %v710 = vld [vmem:[#allocation6 + $0xc] sm:$0xf]
        %v711 = vld [vmem:[#allocation6 + $0x10] sm:$0xf]
        %v712 = vld [vmem:[#allocation6 + $0x14] sm:$0xf]
        %v713 = vld [vmem:[#allocation6 + $0x18] sm:$0xf]
        %v714 = vld [vmem:[#allocation6 + $0x1c] sm:$0xf]
        %v715 = vld [vmem:[#allocation6 + $0x20] sm:$0xf]
        %v716 = vld [vmem:[#allocation6 + $0x24] sm:$0xf]
        %v717 = vld [vmem:[#allocation6 + $0x28] sm:$0xf]
        %v718 = vld [vmem:[#allocation6 + $0x2c] sm:$0xf]
        %v719 = vld [vmem:[#allocation6 + $0x30] sm:$0xf]
        %v720 = vld [vmem:[#allocation6 + $0x34] sm:$0xf]
        %v721 = vld [vmem:[#allocation6 + $0x38] sm:$0xf]
        %v722 = vld [vmem:[#allocation6 + $0x3c] sm:$0xf]
        %v739 = vunpack.c.l.b16 %v707
        %v740 = vunpack.c.l.b16 %v708
        %v741 = vunpack.c.l.b16 %v709
        %v742 = vunpack.c.l.b16 %v710
        %v743 = vunpack.c.l.b16 %v711
        %v744 = vunpack.c.l.b16 %v712
        %v745 = vunpack.c.l.b16 %v713
        %v746 = vunpack.c.l.b16 %v714
        %v747 = vunpack.c.l.b16 %v715
        %v748 = vunpack.c.l.b16 %v716
        %v749 = vunpack.c.l.b16 %v717
        %v750 = vunpack.c.l.b16 %v718
        %v751 = vunpack.c.l.b16 %v719
        %v752 = vunpack.c.l.b16 %v720
        %v753 = vunpack.c.l.b16 %v721
        %v754 = vunpack.c.l.b16 %v722
        %v755 = vpack.c.b16 %v740, %v739
        %v756 = vpack.c.b16 %v742, %v741
        %v757 = vpack.c.b16 %v744, %v743
        %v758 = vpack.c.b16 %v746, %v745
        %v759 = vpack.c.b16 %v748, %v747
        %v760 = vpack.c.b16 %v750, %v749
        %v761 = vpack.c.b16 %v752, %v751
        %v762 = vpack.c.b16 %v754, %v753
        %771 = vmatpush.bf16.msra.mxu0 %v762
        %772 = vmatpush.bf16.msra.mxu0 %v761
        %773 = vmatpush.bf16.msra.mxu0 %v760
        %774 = vmatpush.bf16.msra.mxu0 %v759
        %775 = vmatpush.bf16.msra.mxu0 %v758
        %776 = vmatpush.bf16.msra.mxu0 %v757
        %777 = vmatpush.bf16.msra.mxu0 %v756
        %778 = vmatpush.bf16.msra.mxu0 %v755
        %779 = vmatmul.bf16.gmra.mxu0 %v643
        %v780 = vpop.f32.mrf.mxu0
        %v781 = vadd.f32 0.0, %v780
        %v782 = vpop.f32.mrf.mxu0
        %v783 = vadd.f32 0.0, %v782
        %784 = vdwg.mxu0
        %v785 = vld [vmem:[%s9] sm:$0xff]
        %v786 = vld [vmem:[%s9 + $0x8] sm:$0xff]
        %v787 = vld [vmem:[%s9 + $0x10] sm:$0xff]
        %v788 = vld [vmem:[%s9 + $0x18] sm:$0xff]
        %v789 = vld [vmem:[%s9 + $0x20] sm:$0xff]
        %v790 = vld [vmem:[%s9 + $0x28] sm:$0xff]
        %v791 = vld [vmem:[%s9 + $0x30] sm:$0xff]
        %v792 = vld [vmem:[%s9 + $0x38] sm:$0xff]
        %v793 = vld [vmem:[%s9 + $0x40] sm:$0xff]
        %v794 = vld [vmem:[%s9 + $0x48] sm:$0xff]
        %v795 = vld [vmem:[%s9 + $0x50] sm:$0xff]
        %v796 = vld [vmem:[%s9 + $0x58] sm:$0xff]
        %v797 = vld [vmem:[%s9 + $0x60] sm:$0xff]
        %v798 = vld [vmem:[%s9 + $0x68] sm:$0xff]
        %v799 = vld [vmem:[%s9 + $0x70] sm:$0xff]
        %v800 = vld [vmem:[%s9 + $0x78] sm:$0xff]
        %v801 = vld [vmem:[#allocation8] sm:$0x1]
        %v802 = vld [vmem:[#allocation9] sm:$0x1]
        %v803 = vmul.f32 %v620, %v620
        %804 = vmatpush.msra.mxu0 %v800
        %805 = vmatpush.msra.mxu0 %v799
        %806 = vmatpush.msra.mxu0 %v798
        %807 = vmatpush.msra.mxu0 %v797
        %808 = vmatpush.msra.mxu0 %v796
        %809 = vmatpush.msra.mxu0 %v795
        %810 = vmatpush.msra.mxu0 %v794
        %811 = vmatpush.msra.mxu0 %v793
        %812 = vmatpush.msra.mxu0 %v792
        %813 = vmatpush.msra.mxu0 %v791
        %814 = vmatpush.msra.mxu0 %v790
        %815 = vmatpush.msra.mxu0 %v789
        %816 = vmatpush.msra.mxu0 %v788
        %817 = vmatpush.msra.mxu0 %v787
        %818 = vmatpush.msra.mxu0 %v786
        %819 = vmatpush.msra.mxu0 %v785
        %820 = vmatmul.f32.gmra.mxu0 %v620
        %v821 = vpop.f32.mrf.mxu0
        %v822 = vadd.f32 0.0, %v821
        %823 = vmatmul.f32.gmra.mxu0 %v803
        %v824 = vpop.f32.mrf.mxu0
        %v825 = vadd.f32 0.0, %v824
        %826 = vdwg.mxu0
        %v827 = vmul.f32 %v822, 0.0625
        %v828 = vmul.f32 %v825, 0.0625
        %vm829 = vcmask 64512
        %v831 = vsel %vm829, %v827, 0
        %v834 = vsel %vm829, %v828, 0
        %v837 = vsel %vm829, %v785, 0
        %v840 = vsel %vm829, %v786, 0
        %v843 = vsel %vm829, %v787, 0
        %v846 = vsel %vm829, %v788, 0
        %v849 = vsel %vm829, %v789, 0
        %v852 = vsel %vm829, %v790, 0
        %v855 = vsel %vm829, %v791, 0
        %v858 = vsel %vm829, %v792, 0
        %v861 = vsel %vm829, %v793, 0
        %v864 = vsel %vm829, %v794, 0
        %v867 = vsel %vm829, %v795, 0
        %v870 = vsel %vm829, %v796, 0
        %v873 = vsel %vm829, %v797, 0
        %v876 = vsel %vm829, %v798, 0
        %v879 = vsel %vm829, %v799, 0
        %v882 = vsel %vm829, %v800, 0
        %884 = vmatpush.xpose.msra.mxu0 %v882
        %885 = vmatpush.xpose.msra.mxu0 %v879
        %886 = vmatpush.xpose.msra.mxu0 %v876
        %887 = vmatpush.xpose.msra.mxu0 %v873
        %888 = vmatpush.xpose.msra.mxu0 %v870
        %889 = vmatpush.xpose.msra.mxu0 %v867
        %890 = vmatpush.xpose.msra.mxu0 %v864
        %891 = vmatpush.xpose.msra.mxu0 %v861
        %892 = vmatpush.xpose.msra.mxu0 %v858
        %893 = vmatpush.xpose.msra.mxu0 %v855
        %894 = vmatpush.xpose.msra.mxu0 %v852
        %895 = vmatpush.xpose.msra.mxu0 %v849
        %896 = vmatpush.xpose.msra.mxu0 %v846
        %897 = vmatpush.xpose.msra.mxu0 %v843
        %898 = vmatpush.xpose.msra.mxu0 %v840
        %899 = vmatpush.xpose.msra.mxu0 %v837
        %900 = vmatmul.f32.gmra.mxu0 %v831
        %v901 = vpop.f32.mrf.mxu0
        %v902 = vadd.f32 0.0, %v901
        %903 = vmatmul.f32.gmra.mxu0 %v834
        %v904 = vpop.f32.mrf.mxu0
        %v905 = vadd.f32 0.0, %v904
        %906 = vdwg.mxu0
        %v907 = vmul.f32 %v902, %v902
        %v908 = vsub.f32 %v905, %v907
        %v909 = vsub.f32 %v620, %v902
        %v910 = vadd.f32 %v908, 1e-05
        %v911 = vrsqrt.pop %v910
        %v912 = vmul.f32 %v911, %v910
        %v913 = vmul.f32 %v912, %v911
        %v914 = vmul.f32 0.5, %v913
        %v915 = vsub.f32 1.5, %v914
        %v916 = vmul.f32 %v911, %v915
        %vm917 = vweird.f32 %v910
        %vm918 = vweird.f32 %v911
        %vm919 = vmor %vm917, %vm918
        %v920 = vsel %vm919, %v911, %v916
        %v921 = vmul.f32 %v909, %v920
        %v923 = vperm.slane %v801, 0
        %v925 = vmul.f32 %v921, %v923
        %v927 = vperm.slane %v802, 0
        %v929 = vadd.f32 %v925, %v927
        %v930 = vpack.c.bf16 %v929, %v929
        %v931 = vld [vmem:[#allocation11] sm:$0x1]
        %v932 = vld [vmem:[#allocation12] sm:$0x1]
        %v933 = vmul.f32 %v703, %v703
        %v934 = vmul.f32 %v705, %v705
        %935 = vmatpush.msra.mxu0 %v800
        %936 = vmatpush.msra.mxu0 %v799
        %937 = vmatpush.msra.mxu0 %v798
        %938 = vmatpush.msra.mxu0 %v797
        %939 = vmatpush.msra.mxu0 %v796
        %940 = vmatpush.msra.mxu0 %v795
        %941 = vmatpush.msra.mxu0 %v794
        %942 = vmatpush.msra.mxu0 %v793
        %943 = vmatpush.msra.mxu0 %v792
        %944 = vmatpush.msra.mxu0 %v791
        %945 = vmatpush.msra.mxu0 %v790
        %946 = vmatpush.msra.mxu0 %v789
        %947 = vmatpush.msra.mxu0 %v788
        %948 = vmatpush.msra.mxu0 %v787
        %949 = vmatpush.msra.mxu0 %v786
        %950 = vmatpush.msra.mxu0 %v785
        %951 = vmatmul.f32.gmra.mxu0 %v703
        %v952 = vpop.f32.mrf.mxu0
        %v953 = vadd.f32 0.0, %v952
        %954 = vmatmul.f32.gmra.mxu0 %v705
        %v955 = vpop.f32.mrf.mxu0
        %v956 = vadd.f32 0.0, %v955
        %957 = vmatmul.f32.gmra.mxu0 %v933
        %v958 = vpop.f32.mrf.mxu0
        %v959 = vadd.f32 0.0, %v958
        %960 = vmatmul.f32.gmra.mxu0 %v934
        %v961 = vpop.f32.mrf.mxu0
        %v962 = vadd.f32 0.0, %v961
        %963 = vdwg.mxu0
        %v964 = vmul.f32 %v953, 0.0625
        %v965 = vmul.f32 %v956, 0.0625
        %v966 = vmul.f32 %v959, 0.0625
        %v967 = vmul.f32 %v962, 0.0625
        %v969 = vsel %vm829, %v964, 0
        %v972 = vsel %vm829, %v965, 0
        %v975 = vsel %vm829, %v966, 0
        %v978 = vsel %vm829, %v967, 0
        %980 = vmatpush.xpose.msra.mxu0 %v882
        %981 = vmatpush.xpose.msra.mxu0 %v879
        %982 = vmatpush.xpose.msra.mxu0 %v876
        %983 = vmatpush.xpose.msra.mxu0 %v873
        %984 = vmatpush.xpose.msra.mxu0 %v870
        %985 = vmatpush.xpose.msra.mxu0 %v867
        %986 = vmatpush.xpose.msra.mxu0 %v864
        %987 = vmatpush.xpose.msra.mxu0 %v861
        %988 = vmatpush.xpose.msra.mxu0 %v858
        %989 = vmatpush.xpose.msra.mxu0 %v855
        %990 = vmatpush.xpose.msra.mxu0 %v852
        %991 = vmatpush.xpose.msra.mxu0 %v849
        %992 = vmatpush.xpose.msra.mxu0 %v846
        %993 = vmatpush.xpose.msra.mxu0 %v843
        %994 = vmatpush.xpose.msra.mxu0 %v840
        %995 = vmatpush.xpose.msra.mxu0 %v837
        %996 = vmatmul.f32.gmra.mxu0 %v969
        %v997 = vpop.f32.mrf.mxu0
        %v998 = vadd.f32 0.0, %v997
        %999 = vmatmul.f32.gmra.mxu0 %v972
        %v1000 = vpop.f32.mrf.mxu0
        %v1001 = vadd.f32 0.0, %v1000
        %1002 = vmatmul.f32.gmra.mxu0 %v975
        %v1003 = vpop.f32.mrf.mxu0
        %v1004 = vadd.f32 0.0, %v1003
        %1005 = vmatmul.f32.gmra.mxu0 %v978
        %v1006 = vpop.f32.mrf.mxu0
        %v1007 = vadd.f32 0.0, %v1006
        %1008 = vdwg.mxu0
        %v1009 = vmul.f32 %v998, %v998
        %v1010 = vmul.f32 %v1001, %v1001
        %v1011 = vsub.f32 %v1004, %v1009
        %v1012 = vsub.f32 %v1007, %v1010
        %v1013 = vsub.f32 %v703, %v998
        %v1014 = vsub.f32 %v705, %v1001
        %v1015 = vadd.f32 %v1011, 1e-05
        %v1016 = vadd.f32 %v1012, 1e-05
        %v1017 = vrsqrt.pop %v1015
        %v1018 = vmul.f32 %v1017, %v1015
        %v1019 = vmul.f32 %v1018, %v1017
        %v1020 = vmul.f32 0.5, %v1019
        %v1021 = vsub.f32 1.5, %v1020
        %v1022 = vmul.f32 %v1017, %v1021
        %vm1023 = vweird.f32 %v1015
        %vm1024 = vweird.f32 %v1017
        %vm1025 = vmor %vm1023, %vm1024
        %v1026 = vsel %vm1025, %v1017, %v1022
        %v1027 = vrsqrt.pop %v1016
        %v1028 = vmul.f32 %v1027, %v1016
        %v1029 = vmul.f32 %v1028, %v1027
        %v1030 = vmul.f32 0.5, %v1029
        %v1031 = vsub.f32 1.5, %v1030
        %v1032 = vmul.f32 %v1027, %v1031
        %vm1033 = vweird.f32 %v1016
        %vm1034 = vweird.f32 %v1027
        %vm1035 = vmor %vm1033, %vm1034
        %v1036 = vsel %vm1035, %v1027, %v1032
        %v1037 = vmul.f32 %v1013, %v1026
        %v1038 = vmul.f32 %v1014, %v1036
        %v1040 = vperm.slane %v931, 0
        %v1042 = vmul.f32 %v1037, %v1040
        %v1043 = vmul.f32 %v1038, %v1040
        %v1045 = vperm.slane %v932, 0
        %v1047 = vadd.f32 %v1042, %v1045
        %v1048 = vadd.f32 %v1043, %v1045
        %v1049 = vpack.c.bf16 %v1047, %v1047
        %v1050 = vpack.c.bf16 %v1048, %v1048
        %v1051 = vpack.c.bf16 %v781, %v781
        %v1052 = vpack.c.bf16 %v783, %v783
        %v1055 = vunpack.c.l.b16 %v1049
        %v1056 = vunpack.c.l.b16 %v1050
        %v1057 = vpack.c.b16 %v1056, %v1055
        %vm1058 = vcmask 130048
        %v1060 = vsel %vm1058, %v930, 0
        %v1063 = vsel %vm1058, %v1057, 0
        %1065 = vmatpush.bf16.xpose.msra.mxu0 0
        %1066 = vmatpush.bf16.xpose.msra.mxu0 0
        %1067 = vmatpush.bf16.xpose.msra.mxu0 0
        %1068 = vmatpush.bf16.xpose.msra.mxu0 0
        %1069 = vmatpush.bf16.xpose.msra.mxu0 0
        %1070 = vmatpush.bf16.xpose.msra.mxu0 0
        %1071 = vmatpush.bf16.xpose.msra.mxu0 0
        %1072 = vmatpush.bf16.xpose.msra.mxu0 %v1063
        %1073 = vmatmul.bf16.gmra.mxu0 %v1060
        %v1074 = vpop.f32.mrf.mxu0
        %v1075 = vadd.f32 0.0, %v1074
        %v1076 = vpop.f32.mrf.mxu0
        %1077 = vdwg.mxu0
        %v1078 = vsel %vm1058, %v1075, -inf
        %1079 = vmax.xlane.f32.xlu0 %v1078
        %v1080 = vpop.xlane.xlu0 %1079
        %v1081 = vsub.f32 %v1075, %v1080
        %v1082 = vmul.f32 %v1081, 1.442695
        %v1083 = vpow.pop %v1082
        %v1084 = vsel %vm1058, %v1083, 0.0
        %1085 = vadd.xlane.f32.xlu0 %v1084
        %v1086 = vpop.xlane.xlu0 %1085
        %v1087 = vpack.c.bf16 %v1083, %v1083
        %v1090 = vunpack.c.l.b16 %v1051
        %v1091 = vunpack.c.l.b16 %v1052
        %v1092 = vpack.c.b16 %v1091, %v1090
        %v1095 = vsel %vm1058, %v1087, 0
        %1097 = vmatpush.bf16.msra.mxu0 0
        %1098 = vmatpush.bf16.msra.mxu0 0
        %1099 = vmatpush.bf16.msra.mxu0 0
        %1100 = vmatpush.bf16.msra.mxu0 0
        %1101 = vmatpush.bf16.msra.mxu0 0
        %1102 = vmatpush.bf16.msra.mxu0 0
        %1103 = vmatpush.bf16.msra.mxu0 0
        %1104 = vmatpush.bf16.msra.mxu0 %v1092
        %1105 = vmatmul.bf16.gmra.mxu0 %v1095
        %v1106 = vpop.f32.mrf.mxu0
        %v1107 = vadd.f32 0.0, %v1106
        %v1108 = vpop.f32.mrf.mxu0
        %1109 = vdwg.mxu0
        %v1110 = vrcp.pop %v1086
        %v1111 = vmul.f32 %v1107, %v1110
        %v1112 = vpack.c.bf16 %v1111, %v1111
        %vm1113 = vcmask 125952
        %1114 = vst.msk [vmem:[#allocation2] sm:$0xf] %vm1113, %v1112
        %v1116 = vunpack.c.l.b16 %v930
        %v1117 = vpack.c.b16 %v1116, %v1116
        %1118 = vrot.lane.b32.xlu0 %v1117, 112
        %v1119 = vpop.permute.xlu0 %1118
        %1120 = vrot.lane.b32.xlu0 %v1057, 112
        %v1121 = vpop.permute.xlu0 %1120
        %v1123 = vsel %vm1058, %v1119, 0
        %v1126 = vsel %vm1058, %v1121, 0
        %1128 = vmatpush.bf16.xpose.msra.mxu0 0
        %1129 = vmatpush.bf16.xpose.msra.mxu0 0
        %1130 = vmatpush.bf16.xpose.msra.mxu0 0
        %1131 = vmatpush.bf16.xpose.msra.mxu0 0
        %1132 = vmatpush.bf16.xpose.msra.mxu0 0
        %1133 = vmatpush.bf16.xpose.msra.mxu0 0
        %1134 = vmatpush.bf16.xpose.msra.mxu0 0
        %1135 = vmatpush.bf16.xpose.msra.mxu0 %v1126
        %1136 = vmatmul.bf16.gmra.mxu0 %v1123
        %v1137 = vpop.f32.mrf.mxu0
        %v1138 = vadd.f32 0.0, %v1137
        %v1139 = vpop.f32.mrf.mxu0
        %1140 = vdwg.mxu0
        %v1141 = vsel %vm1058, %v1138, -inf
        %1142 = vmax.xlane.f32.xlu0 %v1141
        %v1143 = vpop.xlane.xlu0 %1142
        %v1144 = vsub.f32 %v1138, %v1143
        %v1145 = vmul.f32 %v1144, 1.442695
        %v1146 = vpow.pop %v1145
        %v1147 = vsel %vm1058, %v1146, 0.0
        %1148 = vadd.xlane.f32.xlu0 %v1147
        %v1149 = vpop.xlane.xlu0 %1148
        %v1150 = vpack.c.bf16 %v1146, %v1146
        %1151 = vrot.lane.b32.xlu0 %v1092, 112
        %v1152 = vpop.permute.xlu0 %1151
        %v1155 = vsel %vm1058, %v1150, 0
        %1157 = vmatpush.bf16.msra.mxu0 0
        %1158 = vmatpush.bf16.msra.mxu0 0
        %1159 = vmatpush.bf16.msra.mxu0 0
        %1160 = vmatpush.bf16.msra.mxu0 0
        %1161 = vmatpush.bf16.msra.mxu0 0
        %1162 = vmatpush.bf16.msra.mxu0 0
        %1163 = vmatpush.bf16.msra.mxu0 0
        %1164 = vmatpush.bf16.msra.mxu0 %v1152
        %1165 = vmatmul.bf16.gmra.mxu0 %v1155
        %v1166 = vpop.f32.mrf.mxu0
        %v1167 = vadd.f32 0.0, %v1166
        %v1168 = vpop.f32.mrf.mxu0
        %1169 = vdwg.mxu0
        %v1170 = vrcp.pop %v1149
        %v1171 = vmul.f32 %v1167, %v1170
        %v1172 = vpack.c.bf16 %v1171, %v1171
        %1174 = vrot.lane.b32.xlu0 %v1172, 16
        %v1175 = vpop.permute.xlu0 %1174
        %vm1177 = vcmask 257152
        %1178 = vst.msk [vmem:[#allocation2] sm:$0xf] %vm1177, %v1175
        %1179 = vrot.lane.b32.xlu0 %v1117, 96
        %v1180 = vpop.permute.xlu0 %1179
        %1181 = vrot.lane.b32.xlu0 %v1057, 96
        %v1182 = vpop.permute.xlu0 %1181
        %v1184 = vsel %vm1058, %v1180, 0
        %v1187 = vsel %vm1058, %v1182, 0
        %1189 = vmatpush.bf16.xpose.msra.mxu0 0
        %1190 = vmatpush.bf16.xpose.msra.mxu0 0
        %1191 = vmatpush.bf16.xpose.msra.mxu0 0
        %1192 = vmatpush.bf16.xpose.msra.mxu0 0
        %1193 = vmatpush.bf16.xpose.msra.mxu0 0
        %1194 = vmatpush.bf16.xpose.msra.mxu0 0
        %1195 = vmatpush.bf16.xpose.msra.mxu0 0
        %1196 = vmatpush.bf16.xpose.msra.mxu0 %v1187
        %1197 = vmatmul.bf16.gmra.mxu0 %v1184
        %v1198 = vpop.f32.mrf.mxu0
        %v1199 = vadd.f32 0.0, %v1198
        %v1200 = vpop.f32.mrf.mxu0
        %1201 = vdwg.mxu0
        %v1202 = vsel %vm1058, %v1199, -inf
        %1203 = vmax.xlane.f32.xlu0 %v1202
        %v1204 = vpop.xlane.xlu0 %1203
        %v1205 = vsub.f32 %v1199, %v1204
        %v1206 = vmul.f32 %v1205, 1.442695
        %v1207 = vpow.pop %v1206
        %v1208 = vsel %vm1058, %v1207, 0.0
        %1209 = vadd.xlane.f32.xlu0 %v1208
        %v1210 = vpop.xlane.xlu0 %1209
        %v1211 = vpack.c.bf16 %v1207, %v1207
        %1212 = vrot.lane.b32.xlu0 %v1092, 96
        %v1213 = vpop.permute.xlu0 %1212
        %v1216 = vsel %vm1058, %v1211, 0
        %1218 = vmatpush.bf16.msra.mxu0 0
        %1219 = vmatpush.bf16.msra.mxu0 0
        %1220 = vmatpush.bf16.msra.mxu0 0
        %1221 = vmatpush.bf16.msra.mxu0 0
        %1222 = vmatpush.bf16.msra.mxu0 0
        %1223 = vmatpush.bf16.msra.mxu0 0
        %1224 = vmatpush.bf16.msra.mxu0 0
        %1225 = vmatpush.bf16.msra.mxu0 %v1213
        %1226 = vmatmul.bf16.gmra.mxu0 %v1216
        %v1227 = vpop.f32.mrf.mxu0
        %v1228 = vadd.f32 0.0, %v1227
        %v1229 = vpop.f32.mrf.mxu0
        %1230 = vdwg.mxu0
        %v1231 = vrcp.pop %v1210
        %v1232 = vmul.f32 %v1228, %v1231
        %v1233 = vpack.c.bf16 %v1232, %v1232
        %1235 = vrot.lane.b32.xlu0 %v1233, 32
        %v1236 = vpop.permute.xlu0 %1235
        %vm1238 = vcmask 388352
        %1239 = vst.msk [vmem:[#allocation2] sm:$0xf] %vm1238, %v1236
        %1240 = vrot.lane.b32.xlu0 %v1117, 80
        %v1241 = vpop.permute.xlu0 %1240
        %1242 = vrot.lane.b32.xlu0 %v1057, 80
        %v1243 = vpop.permute.xlu0 %1242
        %v1245 = vsel %vm1058, %v1241, 0
        %v1248 = vsel %vm1058, %v1243, 0
        %1250 = vmatpush.bf16.xpose.msra.mxu0 0
        %1251 = vmatpush.bf16.xpose.msra.mxu0 0
        %1252 = vmatpush.bf16.xpose.msra.mxu0 0
        %1253 = vmatpush.bf16.xpose.msra.mxu0 0
        %1254 = vmatpush.bf16.xpose.msra.mxu0 0
        %1255 = vmatpush.bf16.xpose.msra.mxu0 0
        %1256 = vmatpush.bf16.xpose.msra.mxu0 0
        %1257 = vmatpush.bf16.xpose.msra.mxu0 %v1248
        %1258 = vmatmul.bf16.gmra.mxu0 %v1245
        %v1259 = vpop.f32.mrf.mxu0
        %v1260 = vadd.f32 0.0, %v1259
        %v1261 = vpop.f32.mrf.mxu0
        %1262 = vdwg.mxu0
        %v1263 = vsel %vm1058, %v1260, -inf
        %1264 = vmax.xlane.f32.xlu0 %v1263
        %v1265 = vpop.xlane.xlu0 %1264
        %v1266 = vsub.f32 %v1260, %v1265
        %v1267 = vmul.f32 %v1266, 1.442695
        %v1268 = vpow.pop %v1267
        %v1269 = vsel %vm1058, %v1268, 0.0
        %1270 = vadd.xlane.f32.xlu0 %v1269
        %v1271 = vpop.xlane.xlu0 %1270
        %v1272 = vpack.c.bf16 %v1268, %v1268
        %1273 = vrot.lane.b32.xlu0 %v1092, 80
        %v1274 = vpop.permute.xlu0 %1273
        %v1277 = vsel %vm1058, %v1272, 0
        %1279 = vmatpush.bf16.msra.mxu0 0
        %1280 = vmatpush.bf16.msra.mxu0 0
        %1281 = vmatpush.bf16.msra.mxu0 0
        %1282 = vmatpush.bf16.msra.mxu0 0
        %1283 = vmatpush.bf16.msra.mxu0 0
        %1284 = vmatpush.bf16.msra.mxu0 0
        %1285 = vmatpush.bf16.msra.mxu0 0
        %1286 = vmatpush.bf16.msra.mxu0 %v1274
        %1287 = vmatmul.bf16.gmra.mxu0 %v1277
        %v1288 = vpop.f32.mrf.mxu0
        %v1289 = vadd.f32 0.0, %v1288
        %v1290 = vpop.f32.mrf.mxu0
        %1291 = vdwg.mxu0
        %v1292 = vrcp.pop %v1271
        %v1293 = vmul.f32 %v1289, %v1292
        %v1294 = vpack.c.bf16 %v1293, %v1293
        %1296 = vrot.lane.b32.xlu0 %v1294, 48
        %v1297 = vpop.permute.xlu0 %1296
        %vm1299 = vcmask 519552
        %1300 = vst.msk [vmem:[#allocation2] sm:$0xf] %vm1299, %v1297
        %1301 = vrot.lane.b32.xlu0 %v1117, 64
        %v1302 = vpop.permute.xlu0 %1301
        %1303 = vrot.lane.b32.xlu0 %v1057, 64
        %v1304 = vpop.permute.xlu0 %1303
        %v1306 = vsel %vm1058, %v1302, 0
        %v1309 = vsel %vm1058, %v1304, 0
        %1311 = vmatpush.bf16.xpose.msra.mxu0 0
        %1312 = vmatpush.bf16.xpose.msra.mxu0 0
        %1313 = vmatpush.bf16.xpose.msra.mxu0 0
        %1314 = vmatpush.bf16.xpose.msra.mxu0 0
        %1315 = vmatpush.bf16.xpose.msra.mxu0 0
        %1316 = vmatpush.bf16.xpose.msra.mxu0 0
        %1317 = vmatpush.bf16.xpose.msra.mxu0 0
        %1318 = vmatpush.bf16.xpose.msra.mxu0 %v1309
        %1319 = vmatmul.bf16.gmra.mxu0 %v1306
        %v1320 = vpop.f32.mrf.mxu0
        %v1321 = vadd.f32 0.0, %v1320
        %v1322 = vpop.f32.mrf.mxu0
        %1323 = vdwg.mxu0
        %v1324 = vsel %vm1058, %v1321, -inf
        %1325 = vmax.xlane.f32.xlu0 %v1324
        %v1326 = vpop.xlane.xlu0 %1325
        %v1327 = vsub.f32 %v1321, %v1326
        %v1328 = vmul.f32 %v1327, 1.442695
        %v1329 = vpow.pop %v1328
        %v1330 = vsel %vm1058, %v1329, 0.0
        %1331 = vadd.xlane.f32.xlu0 %v1330
        %v1332 = vpop.xlane.xlu0 %1331
        %v1333 = vpack.c.bf16 %v1329, %v1329
        %1334 = vrot.lane.b32.xlu0 %v1092, 64
        %v1335 = vpop.permute.xlu0 %1334
        %v1338 = vsel %vm1058, %v1333, 0
        %1340 = vmatpush.bf16.msra.mxu0 0
        %1341 = vmatpush.bf16.msra.mxu0 0
        %1342 = vmatpush.bf16.msra.mxu0 0
        %1343 = vmatpush.bf16.msra.mxu0 0
        %1344 = vmatpush.bf16.msra.mxu0 0
        %1345 = vmatpush.bf16.msra.mxu0 0
        %1346 = vmatpush.bf16.msra.mxu0 0
        %1347 = vmatpush.bf16.msra.mxu0 %v1335
        %1348 = vmatmul.bf16.gmra.mxu0 %v1338
        %v1349 = vpop.f32.mrf.mxu0
        %v1350 = vadd.f32 0.0, %v1349
        %v1351 = vpop.f32.mrf.mxu0
        %1352 = vdwg.mxu0
        %v1353 = vrcp.pop %v1332
        %v1354 = vmul.f32 %v1350, %v1353
        %v1355 = vpack.c.bf16 %v1354, %v1354
        %1357 = vrot.lane.b32.xlu0 %v1355, 64
        %v1358 = vpop.permute.xlu0 %1357
        %vm1360 = vcmask 650752
        %1361 = vst.msk [vmem:[#allocation2] sm:$0xf] %vm1360, %v1358
        %1362 = vrot.lane.b32.xlu0 %v1117, 48
        %v1363 = vpop.permute.xlu0 %1362
        %1364 = vrot.lane.b32.xlu0 %v1057, 48
        %v1365 = vpop.permute.xlu0 %1364
        %v1367 = vsel %vm1058, %v1363, 0
        %v1370 = vsel %vm1058, %v1365, 0
        %1372 = vmatpush.bf16.xpose.msra.mxu0 0
        %1373 = vmatpush.bf16.xpose.msra.mxu0 0
        %1374 = vmatpush.bf16.xpose.msra.mxu0 0
        %1375 = vmatpush.bf16.xpose.msra.mxu0 0
        %1376 = vmatpush.bf16.xpose.msra.mxu0 0
        %1377 = vmatpush.bf16.xpose.msra.mxu0 0
        %1378 = vmatpush.bf16.xpose.msra.mxu0 0
        %1379 = vmatpush.bf16.xpose.msra.mxu0 %v1370
        %1380 = vmatmul.bf16.gmra.mxu0 %v1367
        %v1381 = vpop.f32.mrf.mxu0
        %v1382 = vadd.f32 0.0, %v1381
        %v1383 = vpop.f32.mrf.mxu0
        %1384 = vdwg.mxu0
        %v1385 = vsel %vm1058, %v1382, -inf
        %1386 = vmax.xlane.f32.xlu0 %v1385
        %v1387 = vpop.xlane.xlu0 %1386
        %v1388 = vsub.f32 %v1382, %v1387
        %v1389 = vmul.f32 %v1388, 1.442695
        %v1390 = vpow.pop %v1389
        %v1391 = vsel %vm1058, %v1390, 0.0
        %1392 = vadd.xlane.f32.xlu0 %v1391
        %v1393 = vpop.xlane.xlu0 %1392
        %v1394 = vpack.c.bf16 %v1390, %v1390
        %1395 = vrot.lane.b32.xlu0 %v1092, 48
        %v1396 = vpop.permute.xlu0 %1395
        %v1399 = vsel %vm1058, %v1394, 0
        %1401 = vmatpush.bf16.msra.mxu0 0
        %1402 = vmatpush.bf16.msra.mxu0 0
        %1403 = vmatpush.bf16.msra.mxu0 0
        %1404 = vmatpush.bf16.msra.mxu0 0
        %1405 = vmatpush.bf16.msra.mxu0 0
        %1406 = vmatpush.bf16.msra.mxu0 0
        %1407 = vmatpush.bf16.msra.mxu0 0
        %1408 = vmatpush.bf16.msra.mxu0 %v1396
        %1409 = vmatmul.bf16.gmra.mxu0 %v1399
        %v1410 = vpop.f32.mrf.mxu0
        %v1411 = vadd.f32 0.0, %v1410
        %v1412 = vpop.f32.mrf.mxu0
        %1413 = vdwg.mxu0
        %v1414 = vrcp.pop %v1393
        %v1415 = vmul.f32 %v1411, %v1414
        %v1416 = vpack.c.bf16 %v1415, %v1415
        %1418 = vrot.lane.b32.xlu0 %v1416, 80
        %v1419 = vpop.permute.xlu0 %1418
        %vm1421 = vcmask 781952
        %1422 = vst.msk [vmem:[#allocation2] sm:$0xf] %vm1421, %v1419
        %1423 = vrot.lane.b32.xlu0 %v1117, 32
        %v1424 = vpop.permute.xlu0 %1423
        %1425 = vrot.lane.b32.xlu0 %v1057, 32
        %v1426 = vpop.permute.xlu0 %1425
        %v1428 = vsel %vm1058, %v1424, 0
        %v1431 = vsel %vm1058, %v1426, 0
        %1433 = vmatpush.bf16.xpose.msra.mxu0 0
        %1434 = vmatpush.bf16.xpose.msra.mxu0 0
        %1435 = vmatpush.bf16.xpose.msra.mxu0 0
        %1436 = vmatpush.bf16.xpose.msra.mxu0 0
        %1437 = vmatpush.bf16.xpose.msra.mxu0 0
        %1438 = vmatpush.bf16.xpose.msra.mxu0 0
        %1439 = vmatpush.bf16.xpose.msra.mxu0 0
        %1440 = vmatpush.bf16.xpose.msra.mxu0 %v1431
        %1441 = vmatmul.bf16.gmra.mxu0 %v1428
        %v1442 = vpop.f32.mrf.mxu0
        %v1443 = vadd.f32 0.0, %v1442
        %v1444 = vpop.f32.mrf.mxu0
        %1445 = vdwg.mxu0
        %v1446 = vsel %vm1058, %v1443, -inf
        %1447 = vmax.xlane.f32.xlu0 %v1446
        %v1448 = vpop.xlane.xlu0 %1447
        %v1449 = vsub.f32 %v1443, %v1448
        %v1450 = vmul.f32 %v1449, 1.442695
        %v1451 = vpow.pop %v1450
        %v1452 = vsel %vm1058, %v1451, 0.0
        %1453 = vadd.xlane.f32.xlu0 %v1452
        %v1454 = vpop.xlane.xlu0 %1453
        %v1455 = vpack.c.bf16 %v1451, %v1451
        %1456 = vrot.lane.b32.xlu0 %v1092, 32
        %v1457 = vpop.permute.xlu0 %1456
        %v1460 = vsel %vm1058, %v1455, 0
        %1462 = vmatpush.bf16.msra.mxu0 0
        %1463 = vmatpush.bf16.msra.mxu0 0
        %1464 = vmatpush.bf16.msra.mxu0 0
        %1465 = vmatpush.bf16.msra.mxu0 0
        %1466 = vmatpush.bf16.msra.mxu0 0
        %1467 = vmatpush.bf16.msra.mxu0 0
        %1468 = vmatpush.bf16.msra.mxu0 0
        %1469 = vmatpush.bf16.msra.mxu0 %v1457
        %1470 = vmatmul.bf16.gmra.mxu0 %v1460
        %v1471 = vpop.f32.mrf.mxu0
        %v1472 = vadd.f32 0.0, %v1471
        %v1473 = vpop.f32.mrf.mxu0
        %1474 = vdwg.mxu0
        %v1475 = vrcp.pop %v1454
        %v1476 = vmul.f32 %v1472, %v1475
        %v1477 = vpack.c.bf16 %v1476, %v1476
        %1479 = vrot.lane.b32.xlu0 %v1477, 96
        %v1480 = vpop.permute.xlu0 %1479
        %vm1482 = vcmask 913152
        %1483 = vst.msk [vmem:[#allocation2] sm:$0xf] %vm1482, %v1480
        %1484 = vrot.lane.b32.xlu0 %v1117, 16
        %v1485 = vpop.permute.xlu0 %1484
        %1486 = vrot.lane.b32.xlu0 %v1057, 16
        %v1487 = vpop.permute.xlu0 %1486
        %v1489 = vsel %vm1058, %v1485, 0
        %v1492 = vsel %vm1058, %v1487, 0
        %1494 = vmatpush.bf16.xpose.msra.mxu0 0
        %1495 = vmatpush.bf16.xpose.msra.mxu0 0
        %1496 = vmatpush.bf16.xpose.msra.mxu0 0
        %1497 = vmatpush.bf16.xpose.msra.mxu0 0
        %1498 = vmatpush.bf16.xpose.msra.mxu0 0
        %1499 = vmatpush.bf16.xpose.msra.mxu0 0
        %1500 = vmatpush.bf16.xpose.msra.mxu0 0
        %1501 = vmatpush.bf16.xpose.msra.mxu0 %v1492
        %1502 = vmatmul.bf16.gmra.mxu0 %v1489
        %v1503 = vpop.f32.mrf.mxu0
        %v1504 = vadd.f32 0.0, %v1503
        %v1505 = vpop.f32.mrf.mxu0
        %1506 = vdwg.mxu0
        %v1507 = vsel %vm1058, %v1504, -inf
        %1508 = vmax.xlane.f32.xlu0 %v1507
        %v1509 = vpop.xlane.xlu0 %1508
        %v1510 = vsub.f32 %v1504, %v1509
        %v1511 = vmul.f32 %v1510, 1.442695
        %v1512 = vpow.pop %v1511
        %v1513 = vsel %vm1058, %v1512, 0.0
        %1514 = vadd.xlane.f32.xlu0 %v1513
        %v1515 = vpop.xlane.xlu0 %1514
        %v1516 = vpack.c.bf16 %v1512, %v1512
        %1517 = vrot.lane.b32.xlu0 %v1092, 16
        %v1518 = vpop.permute.xlu0 %1517
        %v1521 = vsel %vm1058, %v1516, 0
        %1523 = vmatpush.bf16.msra.mxu0 0
        %1524 = vmatpush.bf16.msra.mxu0 0
        %1525 = vmatpush.bf16.msra.mxu0 0
        %1526 = vmatpush.bf16.msra.mxu0 0
        %1527 = vmatpush.bf16.msra.mxu0 0
        %1528 = vmatpush.bf16.msra.mxu0 0
        %1529 = vmatpush.bf16.msra.mxu0 0
        %1530 = vmatpush.bf16.msra.mxu0 %v1518
        %1531 = vmatmul.bf16.gmra.mxu0 %v1521
        %v1532 = vpop.f32.mrf.mxu0
        %v1533 = vadd.f32 0.0, %v1532
        %v1534 = vpop.f32.mrf.mxu0
        %1535 = vdwg.mxu0
        %v1536 = vrcp.pop %v1515
        %v1537 = vmul.f32 %v1533, %v1536
        %v1538 = vpack.c.bf16 %v1537, %v1537
        %1540 = vrot.lane.b32.xlu0 %v1538, 112
        %v1541 = vpop.permute.xlu0 %1540
        %vm1543 = vcmask 1044352
        %1544 = vst.msk [vmem:[#allocation2] sm:$0xf] %vm1543, %v1541
        %v1545 = vld [vmem:[#allocation2] sm:$0xf]
        %v1546 = vld [vmem:[#allocation14] sm:$0xf]
        %v1547 = vld [vmem:[#allocation14 + $0x4] sm:$0xf]
        %v1548 = vld [vmem:[#allocation14 + $0x8] sm:$0xf]
        %v1549 = vld [vmem:[#allocation14 + $0xc] sm:$0xf]
        %v1550 = vld [vmem:[#allocation14 + $0x10] sm:$0xf]
        %v1551 = vld [vmem:[#allocation14 + $0x14] sm:$0xf]
        %v1552 = vld [vmem:[#allocation14 + $0x18] sm:$0xf]
        %v1553 = vld [vmem:[#allocation14 + $0x1c] sm:$0xf]
        %v1554 = vld [vmem:[#allocation14 + $0x20] sm:$0xf]
        %v1555 = vld [vmem:[#allocation14 + $0x24] sm:$0xf]
        %v1556 = vld [vmem:[#allocation14 + $0x28] sm:$0xf]
        %v1557 = vld [vmem:[#allocation14 + $0x2c] sm:$0xf]
        %v1558 = vld [vmem:[#allocation14 + $0x30] sm:$0xf]
        %v1559 = vld [vmem:[#allocation14 + $0x34] sm:$0xf]
        %v1560 = vld [vmem:[#allocation14 + $0x38] sm:$0xf]
        %v1561 = vld [vmem:[#allocation14 + $0x3c] sm:$0xf]
        %v1562 = vld [vmem:[%s11] sm:$0x1]
        %v1564 = vperm.slane %v1562, 0
        %v1582 = vunpack.c.l.b16 %v1546
        %v1583 = vunpack.c.l.b16 %v1547
        %v1584 = vunpack.c.l.b16 %v1548
        %v1585 = vunpack.c.l.b16 %v1549
        %v1586 = vunpack.c.l.b16 %v1550
        %v1587 = vunpack.c.l.b16 %v1551
        %v1588 = vunpack.c.l.b16 %v1552
        %v1589 = vunpack.c.l.b16 %v1553
        %v1590 = vunpack.c.l.b16 %v1554
        %v1591 = vunpack.c.l.b16 %v1555
        %v1592 = vunpack.c.l.b16 %v1556
        %v1593 = vunpack.c.l.b16 %v1557
        %v1594 = vunpack.c.l.b16 %v1558
        %v1595 = vunpack.c.l.b16 %v1559
        %v1596 = vunpack.c.l.b16 %v1560
        %v1597 = vunpack.c.l.b16 %v1561
        %v1598 = vpack.c.b16 %v1583, %v1582
        %v1599 = vpack.c.b16 %v1585, %v1584
        %v1600 = vpack.c.b16 %v1587, %v1586
        %v1601 = vpack.c.b16 %v1589, %v1588
        %v1602 = vpack.c.b16 %v1591, %v1590
        %v1603 = vpack.c.b16 %v1593, %v1592
        %v1604 = vpack.c.b16 %v1595, %v1594
        %v1605 = vpack.c.b16 %v1597, %v1596
        %1614 = vmatpush.bf16.msra.mxu0 %v1605
        %1615 = vmatpush.bf16.msra.mxu0 %v1604
        %1616 = vmatpush.bf16.msra.mxu0 %v1603
        %1617 = vmatpush.bf16.msra.mxu0 %v1602
        %1618 = vmatpush.bf16.msra.mxu0 %v1601
        %1619 = vmatpush.bf16.msra.mxu0 %v1600
        %1620 = vmatpush.bf16.msra.mxu0 %v1599
        %1621 = vmatpush.bf16.msra.mxu0 %v1598
        %1622 = vmatmul.bf16.gmra.mxu0 %v1545
        %v1623 = vpop.f32.mrf.mxu0
        %v1624 = vadd.f32 %v1564, %v1623
        %v1625 = vpop.f32.mrf.mxu0
        %1626 = vdwg.mxu0
        %1627 = vst [vmem:[%s537] sm:$0xff] %v1624
        %s1628 = sand.u32 %s302, 1
        %s1629 = scalar_lea.sflag [#allocation5], %s1628
        %s1630 = sand.u32 %s302, 1
        %s1631 = smul.addr %s1630, 8
        %s1632 = scalar_lea.vmem [#allocation15], %s1631
        // Predicated region
        $region97: #{tpu_custom_call.1} parent=67 // pred_check
          %p1633 = pneg %p312
        $region98: #{tpu_custom_call.1} parent=67 // pred_check_branch
          %1635 = sbr.rel (%p1633) target = $region100
        $region99: #{tpu_custom_call.1} parent=67 // pred_region
          %1637 = vsyncadd %s1629, 0
          %s1638 = smul.addr %s32, 8
          %s1639 = scalar_lea.hbm %s12, %s1638
          %s1641 = sshll.u32 %s1632, 4
          %s1642 = int_to_ptr.vmem [resolvable:$true] %s1641
          %s1643 = sshll.u32 %s1639, 4
          %s1644 = int_to_ptr.hbm [resolvable:$true] %s1643
          %1646 = dma.vmem_to_hbm [thread:$0]  %s1642, 128, %s1644, %s1629
        $region100: #{tpu_custom_call.1} parent=67 // pred_fallthru
          _
      $region68: #{tpu_custom_call.1} parent=5 // pred_fallthru
        _
      %p1647 = scmp.le.s32.totalorder 2, %s27
      // Predicated region
      $region101: #{tpu_custom_call.1} parent=5 // pred_check
        %p1648 = pneg %p1647
      $region102: #{tpu_custom_call.1} parent=5 // pred_check_branch
        %1650 = sbr.rel (%p1648) target = $region104
      $region103: #{tpu_custom_call.1} parent=5 // pred_region
        %s1651 = ssub.s32 %s27, 2
        // Predicated region
        $region105: #{tpu_custom_call.1} parent=103 // pred_check
          %p1652 = pneg %p318
        $region106: #{tpu_custom_call.1} parent=103 // pred_check_branch
          %1654 = sbr.rel (%p1652) target = $region108
        $region107: #{tpu_custom_call.1} parent=103 // pred_region
          %s1655 = sand.u32 %s303, 1
          %s1656 = scalar_lea.sflag [#allocation5], %s1655
          %s1657 = sand.u32 %s303, 1
          %s1658 = smul.addr %s1657, 8
          %s1659 = scalar_lea.vmem [#allocation15], %s1658
          %1661 = dma.done %s1656, 128
        $region108: #{tpu_custom_call.1} parent=103 // pred_fallthru
          _
      $region104: #{tpu_custom_call.1} parent=5 // pred_fallthru
        _
    $region6: #{tpu_custom_call.1} parent=1 // loop_footer
      %s31 = sadd.s32 1, %s27
    $region7: #{tpu_custom_call.1} parent=1 // loop_footer_branch
      %26 = sbr.rel target = $region3
    $region8: #{tpu_custom_call.1} parent=1 // loop_exit
      _
    %1662 = vsyncpa [#allocation4], 1
    %s1663 = scalar_lea.sflag [#allocation4], 1
    %1664 = vsyncpa %s1663, 1
    %1665 = vsyncpa [#allocation7], 1
    %1666 = vsyncpa [#allocation10], 1
    %1667 = vsyncpa [#allocation13], 1
    %1668 = vsyncpa [#allocation5], 1
    %s1669 = scalar_lea.sflag [#allocation5], 1
    %1670 = vsyncpa %s1669, 1

</llo_original>
